<compile_context>
chip_gen: v7x
topology: tpu7x:2x2x1
jax: 0.10.0
libtpu: 0.0.40
codegen_flags: <defaults>
</compile_context>

<pallas_src>
import functools

import jax
import jax.numpy as jnp
import numpy as np
from jax import lax
from jax.experimental import pallas as pl
from jax.experimental.pallas import tpu as pltpu

VMEM_LIMIT_BYTES = 32 * 1024 * 1024   # <= physical VMEM on v5e/v6e/v7x; above the v5e default
UNROLL_MAX_STEPS = 16                 # fully unroll the per-chunk recurrence up to this length


def _ceil_to(x, m):
    return ((x + m - 1) // m) * m


def _pick_seq_tile(seq_len, requested=None):
    """Largest divisor of seq_len that is <= requested (default: min(seq_len, 32))."""
    target = requested if requested is not None else min(seq_len, 32)
    target = max(1, min(target, seq_len))
    for ts in range(target, 0, -1):
        if seq_len % ts == 0:
            return ts
    return seq_len


# ----------------------------- Tiled matmul + bias ----------------------------- #

def matmul_bias_kernel(x_ref, w_ref, b_ref, o_ref, acc_ref):
    @pl.when(pl.program_id(2) == 0)
    def _zero():
        acc_ref[...] = jnp.zeros_like(acc_ref)

    acc_ref[...] += jnp.dot(x_ref[...], w_ref[...], preferred_element_type=jnp.float32)

    @pl.when(pl.program_id(2) == pl.num_programs(2) - 1)
    def _store():
        o_ref[...] = (acc_ref[...] + b_ref[...]).astype(o_ref.dtype)


def matmul_bias(x, w, b, *, tm_max=256, tn_max=512, tk_max=512, out_dtype=jnp.float32):
    """Tiled (M,K)@(K,N) + (1,N) -> (M,N) with lane-dense (multiple-of-128) output tiles."""
    M, K = x.shape
    Kw, N = w.shape
    assert K == Kw and b.shape == (1, N)

    tm = tm_max if M >= tm_max else _ceil_to(M, 8)
    tn = tn_max if N >= tn_max else _ceil_to(N, 128)
    tk = tk_max if (K % 128 == 0 and K >= tk_max) else K
    Mp, Np, Kp = _ceil_to(M, tm), _ceil_to(N, tn), _ceil_to(K, tk)

    if (Mp, Kp) != (M, K):
        x = jnp.pad(x, ((0, Mp - M), (0, Kp - K)))
    if (Kp, Np) != (K, N):
        w = jnp.pad(w, ((0, Kp - K), (0, Np - N)))
    if Np != N:
        b = jnp.pad(b, ((0, 0), (0, Np - N)))

    grid = (Mp // tm, Np // tn, Kp // tk)
    out = pl.pallas_call(
        matmul_bias_kernel,
        out_shape=jax.ShapeDtypeStruct((Mp, Np), out_dtype),
        grid_spec=pltpu.PrefetchScalarGridSpec(
            num_scalar_prefetch=0,
            grid=grid,
            in_specs=[pl.BlockSpec((tm, tk), lambda i, j, k: (i, k)),
                      pl.BlockSpec((tk, tn), lambda i, j, k: (k, j)),
                      pl.BlockSpec((1, tn), lambda i, j, k: (0, j))],
            out_specs=pl.BlockSpec((tm, tn), lambda i, j, k: (i, j)),
            scratch_shapes=[pltpu.VMEM((tm, tn), jnp.float32)]),
        compiler_params=pltpu.CompilerParams(
            dimension_semantics=("parallel", "parallel", "arbitrary"),
            vmem_limit_bytes=VMEM_LIMIT_BYTES),
        cost_estimate=pl.CostEstimate(
            flops=2 * Mp * Np * Kp,
            transcendentals=0,
            bytes_accessed=(Mp * Kp * x.dtype.itemsize + Kp * Np * w.dtype.itemsize
                            + Np * b.dtype.itemsize
                            + Mp * Np * jnp.dtype(out_dtype).itemsize)),
    )(x, w, b)

    if (Mp, Np) != (M, N):
        out = out[:M, :N]
    return out


# ----------------------------- LSTM recurrence kernel ----------------------------- #

def lstm_chunk_kernel(gx_ref, h0_ref, c0_ref, whh_ref,
                      y_ref, hn_ref, cn_ref, h_sc, c_sc):
    """One S-chunk of the LSTM recurrence (time-major).

    gx_ref : (ts, B, 4H) f32   precomputed input gates x@W_ih + (b_ih+b_hh), order (i,f,o,g)
    whh_ref: (H, 4H)     bf16  transposed hidden weights, same gate order
    y_ref  : (ts, B, H)  f32   per-step hidden outputs for this chunk
    h_sc/c_sc : (B, H)   f32   VMEM scratch carrying state across grid steps
    """
    H = h0_ref.shape[-1]
    ts = gx_ref.shape[0]

    @pl.when(pl.program_id(0) == 0)
    def _init():
        h_sc[...] = h0_ref[...]
        c_sc[...] = c0_ref[...]

    whh = whh_ref[...]   # hoisted: resident for the whole chunk

    def cell(t, h, c):
        gates = gx_ref[t] + jnp.dot(h.astype(whh.dtype), whh,
                                    preferred_element_type=jnp.float32)   # (B, 4H) f32
        sig = jax.nn.sigmoid(gates[:, : 3 * H])     # one contiguous sigmoid slab: i, f, o
        i = sig[:, 0 * H:1 * H]
        f = sig[:, 1 * H:2 * H]
        o = sig[:, 2 * H:3 * H]
        g = jnp.tanh(gates[:, 3 * H:4 * H])
        c_new = f * c + i * g
        h_new = o * jnp.tanh(c_new)
        y_ref[t] = h_new.astype(y_ref.dtype)
        return h_new, c_new

    h, c = h_sc[...], c_sc[...]
    if ts <= UNROLL_MAX_STEPS:
        for t in range(ts):                          # static full unroll (ts is static)
            h, c = cell(t, h, c)
    else:
        h, c = lax.fori_loop(0, ts, lambda t, hc: cell(t, *hc), (h, c))

    h_sc[...] = h
    c_sc[...] = c
    hn_ref[...] = h
    cn_ref[...] = c


def lstm_pallas(gx, h0, c0, whh_t, *, seq_tile=None):
    S, B, G4 = gx.shape
    H = h0.shape[-1]
    ts = _pick_seq_tile(S, seq_tile)
    grid = (S // ts,)

    return pl.pallas_call(
        lstm_chunk_kernel,
        out_shape=(jax.ShapeDtypeStruct((S, B, H), jnp.float32),
                   jax.ShapeDtypeStruct((B, H), jnp.float32),
                   jax.ShapeDtypeStruct((B, H), jnp.float32)),
        grid_spec=pltpu.PrefetchScalarGridSpec(
            num_scalar_prefetch=0,
            grid=grid,
            in_specs=[pl.BlockSpec((ts, B, G4), lambda s: (s, 0, 0)),
                      pl.BlockSpec((B, H), lambda s: (0, 0)),
                      pl.BlockSpec((B, H), lambda s: (0, 0)),
                      pl.BlockSpec((H, G4), lambda s: (0, 0))],
            out_specs=(pl.BlockSpec((ts, B, H), lambda s: (s, 0, 0)),
                       pl.BlockSpec((B, H), lambda s: (0, 0)),
                       pl.BlockSpec((B, H), lambda s: (0, 0))),
            scratch_shapes=[pltpu.VMEM((B, H), jnp.float32),
                            pltpu.VMEM((B, H), jnp.float32)]),
        compiler_params=pltpu.CompilerParams(
            dimension_semantics=("arbitrary",),      # sequential: carries (h, c) in scratch
            vmem_limit_bytes=VMEM_LIMIT_BYTES),
        cost_estimate=pl.CostEstimate(
            flops=2 * S * B * H * G4,
            transcendentals=4 * S * B * H,
            bytes_accessed=gx.size * 4 + S * B * H * 4 + H * G4 * 2 + 4 * B * H * 4),
    )(gx, h0, c0, whh_t)


# ------------------------------- Parameter packing ------------------------------- #

def pack_params(tp):
    """Repack PyTorch-layout weights for the Pallas kernels.

    Gate rows reorder from PyTorch's (i, f, g, o) to (i, f, o, g) so the kernel can apply
    sigmoid to one contiguous 3H slab.  Matmul operands are bf16 (accumulation is f32 in
    the kernels); biases stay f32.
    """
    def reorder(m):                       # m: (4H, X) with rows in (i, f, g, o)
        i, f, g, o = jnp.split(m, 4, axis=0)
        return jnp.concatenate([i, f, o, g], axis=0)

    b_rnn = reorder((tp["b_ih"] + tp["b_hh"])[:, None])[:, 0]
    return {
        "embed": tp["embed"],                                   # (V, E) f32 (pad row is zero)
        "wih_t": reorder(tp["w_ih"]).T.astype(jnp.bfloat16),    # (E, 4H) bf16
        "whh_t": reorder(tp["w_hh"]).T.astype(jnp.bfloat16),    # (H, 4H) bf16
        "b_rnn": b_rnn[None, :].astype(jnp.float32),            # (1, 4H) f32
        "w_out_t": tp["w_out"].T.astype(jnp.bfloat16),          # (H, V) bf16
        "b_out": tp["b_out"][None, :].astype(jnp.float32),      # (1, V) f32
    }


# ------------------------------------ Forward ------------------------------------ #

def recurrent_decoder2_forward(params, input_ids, encoder_hidden_states, *, seq_tile=None):
    """Mirrors RecurrentDecoder2.forward: returns (logits, (h_n, c_n))."""
    h0_all, c0_all = encoder_hidden_states           # (num_layers=1, B, H)
    h0, c0 = h0_all[0], c0_all[0]
    B, S = input_ids.shape
    H = h0.shape[-1]
    V = params["b_out"].shape[-1]

    # Pad batch to a sublane multiple (8) so vreg ops / stores are unmasked.
    Bp = _ceil_to(B, 8)
    if Bp != B:
        input_ids = jnp.pad(input_ids, ((0, Bp - B), (0, 0)))    # padded rows discarded later
        h0 = jnp.pad(h0, ((0, Bp - B), (0, 0)))
        c0 = jnp.pad(c0, ((0, Bp - B), (0, 0)))

    # Time-major embedding gather: (S, Bp, E); avoids a separate (B,S,E) transpose pass.
    # TODO(synk): fuse the gather into the gate matmul via PrefetchScalarGridSpec + pl.Element.
    emb = jnp.take(params["embed"], input_ids.T, axis=0)

    # Hoisted input-gate precompute: one large MXU matmul instead of S tiny per-step ones.
    E = emb.shape[-1]
    gx = matmul_bias(emb.reshape(S * Bp, E).astype(jnp.bfloat16),
                     params["wih_t"], params["b_rnn"])           # (S*Bp, 4H) f32
    gx = gx.reshape(S, Bp, 4 * H)

    y, hn, cn = lstm_pallas(gx, h0, c0, params["whh_t"], seq_tile=seq_tile)   # (S,Bp,H)

    # Vocab projection on a lane-dense 2-D slab (V padded to a 128 multiple inside).
    y_bsh = jnp.transpose(y[:, :B, :], (1, 0, 2)).reshape(B * S, H).astype(jnp.bfloat16)
    logits = matmul_bias(y_bsh, params["w_out_t"], params["b_out"])           # (B*S, V) f32
    logits = logits.reshape(B, S, V)
    return logits, (hn[:B][None], cn[:B][None])


# ------------------------- Pure-JAX f32 reference check ------------------------- #

def reference_forward(tp, input_ids, encoder_hidden_states):
    h0, c0 = encoder_hidden_states
    H = h0.shape[-1]
    emb = jnp.take(tp["embed"], input_ids, axis=0)               # (B, S, E)
    wih_t, whh_t = tp["w_ih"].T, tp["w_hh"].T
    b = (tp["b_ih"] + tp["b_hh"])[None, :]

    def step(carry, x_t):
        h, c = carry
        gates = x_t @ wih_t + h @ whh_t + b
        i = jax.nn.sigmoid(gates[:, 0 * H:1 * H])
        f = jax.nn.sigmoid(gates[:, 1 * H:2 * H])
        g = jnp.tanh(gates[:, 2 * H:3 * H])
        o = jax.nn.sigmoid(gates[:, 3 * H:4 * H])
        c_new = f * c + i * g
        h_new = o * jnp.tanh(c_new)
        return (h_new, c_new), h_new

    (hn, cn), ys = lax.scan(step, (h0[0], c0[0]), jnp.transpose(emb, (1, 0, 2)))
    y = jnp.transpose(ys, (1, 0, 2))
    logits = y @ tp["w_out"].T + tp["b_out"][None, :]
    return logits, (hn[None], cn[None])


# ---------------------------------------- Main ---------------------------------------- #

if __name__ == "__main__":
    VOCAB = 64
    PAD = 0
    B, S = 2, 8
    E = 32          # embedding_size (= hidden_size default)
    H = 32          # hidden_size
    NUM_LAYERS = 1

    key = jax.random.PRNGKey(0)
    (k_emb, k_wih, k_whh, k_bih, k_bhh, k_wout, k_bout,
     k_ids, k_h0, k_c0) = jax.random.split(key, 10)

    k_rnn = 1.0 / np.sqrt(H)
    k_fc = 1.0 / np.sqrt(H)

    embed = jax.random.normal(k_emb, (VOCAB, E), jnp.float32).at[PAD].set(0.0)
    torch_params = {
        "embed": embed,
        "w_ih": jax.random.uniform(k_wih, (4 * H, E), jnp.float32, -k_rnn, k_rnn),
        "w_hh": jax.random.uniform(k_whh, (4 * H, H), jnp.float32, -k_rnn, k_rnn),
        "b_ih": jax.random.uniform(k_bih, (4 * H,), jnp.float32, -k_rnn, k_rnn),
        "b_hh": jax.random.uniform(k_bhh, (4 * H,), jnp.float32, -k_rnn, k_rnn),
        "w_out": jax.random.uniform(k_wout, (VOCAB, H), jnp.float32, -k_fc, k_fc),
        "b_out": jax.random.uniform(k_bout, (VOCAB,), jnp.float32, -k_fc, k_fc),
    }
    pallas_params = pack_params(torch_params)

    input_ids = jax.random.randint(k_ids, (B, S), 0, VOCAB, dtype=jnp.int32)
    h0 = jax.random.normal(k_h0, (NUM_LAYERS, B, H), jnp.float32)
    c0 = jax.random.normal(k_c0, (NUM_LAYERS, B, H), jnp.float32)

    fwd = jax.jit(functools.partial(recurrent_decoder2_forward, seq_tile=4))
    logits, (hn, cn) = fwd(pallas_params, input_ids, (h0, c0))
    jax.block_until_ready((logits, hn, cn))

    ref_logits, (ref_hn, ref_cn) = reference_forward(torch_params, input_ids, (h0, c0))

    # bf16 MXU operands (f32 accumulation) -> loosened tolerance vs. the pure-f32 reference.
    np.testing.assert_allclose(np.asarray(logits), np.asarray(ref_logits), rtol=5e-2, atol=5e-2)
    np.testing.assert_allclose(np.asarray(hn), np.asarray(ref_hn), rtol=5e-2, atol=5e-2)
    np.testing.assert_allclose(np.asarray(cn), np.asarray(ref_cn), rtol=5e-2, atol=5e-2)

    assert logits.shape == (B, S, VOCAB)
    assert hn.shape == (1, B, H) and cn.shape == (1, B, H)
    print("KERNEL_OK")
</pallas_src>

<mosaic_0001>
module attributes {stable_mosaic.version = 11 : i64} {
  func.func @matmul_bias_kernel(%arg0: i32, %arg1: i32, %arg2: i32, %arg3: memref<64x32xbf16, #tpu.memory_space<vmem>>, %arg4: memref<32x128xbf16, #tpu.memory_space<vmem>>, %arg5: memref<1x128xf32, #tpu.memory_space<vmem>>, %arg6: memref<64x128xf32, #tpu.memory_space<vmem>>, %arg7: memref<64x128xf32, #tpu.memory_space<vmem>>) attributes {dimension_semantics = [#tpu.dimension_semantics<parallel>, #tpu.dimension_semantics<parallel>, #tpu.dimension_semantics<arbitrary>], iteration_bounds = array<i64: 1, 1, 1>, scalar_prefetch = 0 : i64, scratch_operands = 1 : i64, tpu.core_type = #tpu.core_type<tc>, window_params = [{transform_indices = @transform_0, window_bounds = array<i64: 64, 32>}, {transform_indices = @transform_1, window_bounds = array<i64: 32, 128>}, {transform_indices = @transform_2, window_bounds = array<i64: 1, 128>}, {transform_indices = @transform_3, window_bounds = array<i64: 64, 128>}]} {
    %c0_i32 = arith.constant 0 : i32
    %0 = arith.cmpi eq, %arg2, %c0_i32 : i32
    %1 = arith.extui %0 : i1 to i32
    %c0_i32_0 = arith.constant 0 : i32
    %2 = arith.cmpi ne, %1, %c0_i32_0 : i32
    scf.if %2 {
      %cst_10 = arith.constant 0.000000e+00 : f32
      %12 = vector.broadcast %cst_10 : f32 to vector<64x128xf32>
      %c0_11 = arith.constant 0 : index
      %c0_12 = arith.constant 0 : index
      %13 = vector.load %arg7[%c0_11, %c0_12] : memref<64x128xf32, #tpu.memory_space<vmem>>, vector<64x128xf32>
      tpu.vector_store %arg7[%c0_11, %c0_12], %12 {strides = array<i32>} : memref<64x128xf32, #tpu.memory_space<vmem>>, vector<64x128xf32>,
    } else {
    }
    %c0 = arith.constant 0 : index
    %c0_1 = arith.constant 0 : index
    %3 = vector.load %arg7[%c0, %c0_1] : memref<64x128xf32, #tpu.memory_space<vmem>>, vector<64x128xf32>
    %c0_2 = arith.constant 0 : index
    %c0_3 = arith.constant 0 : index
    %4 = vector.load %arg3[%c0_2, %c0_3] : memref<64x32xbf16, #tpu.memory_space<vmem>>, vector<64x32xbf16>
    %c0_4 = arith.constant 0 : index
    %c0_5 = arith.constant 0 : index
    %5 = vector.load %arg4[%c0_4, %c0_5] : memref<32x128xbf16, #tpu.memory_space<vmem>>, vector<32x128xbf16>
    %cst = arith.constant dense<0.000000e+00> : vector<64x128xf32>
    %6 = tpu.matmul %4, %5, %cst {dimension_numbers = #tpu.dot_dimension_numbers<[1], [0], [0], [1], [0, 0, 1, 1], [], []>} : vector<64x32xbf16>, vector<32x128xbf16>, vector<64x128xf32> -> vector<64x128xf32>
    %7 = arith.addf %3, %6 : vector<64x128xf32>
    %c0_6 = arith.constant 0 : index
    %c0_7 = arith.constant 0 : index
    %8 = vector.load %arg7[%c0_6, %c0_7] : memref<64x128xf32, #tpu.memory_space<vmem>>, vector<64x128xf32>
    tpu.vector_store %arg7[%c0_6, %c0_7], %7 {strides = array<i32>} : memref<64x128xf32, #tpu.memory_space<vmem>>, vector<64x128xf32>,
    %c0_i32_8 = arith.constant 0 : i32
    %9 = arith.cmpi eq, %arg2, %c0_i32_8 : i32
    %10 = arith.extui %9 : i1 to i32
    %c0_i32_9 = arith.constant 0 : i32
    %11 = arith.cmpi ne, %10, %c0_i32_9 : i32
    scf.if %11 {
      %c0_10 = arith.constant 0 : index
      %c0_11 = arith.constant 0 : index
      %12 = vector.load %arg7[%c0_10, %c0_11] : memref<64x128xf32, #tpu.memory_space<vmem>>, vector<64x128xf32>
      %c0_12 = arith.constant 0 : index
      %c0_13 = arith.constant 0 : index
      %13 = vector.load %arg5[%c0_12, %c0_13] : memref<1x128xf32, #tpu.memory_space<vmem>>, vector<1x128xf32>
      %14 = vector.broadcast %13 : vector<1x128xf32> to vector<64x128xf32>
      %15 = arith.addf %12, %14 : vector<64x128xf32>
      %c0_14 = arith.constant 0 : index
      %c0_15 = arith.constant 0 : index
      %16 = vector.load %arg6[%c0_14, %c0_15] : memref<64x128xf32, #tpu.memory_space<vmem>>, vector<64x128xf32>
      tpu.vector_store %arg6[%c0_14, %c0_15], %15 {strides = array<i32>} : memref<64x128xf32, #tpu.memory_space<vmem>>, vector<64x128xf32>,
    } else {
    }
    return
  }
  func.func @transform_0(%arg0: i32, %arg1: i32, %arg2: i32) -> (i32, i32) {
    %c0_i32 = arith.constant 0 : i32
    return %arg0, %arg2 : i32, i32
  }
  func.func @transform_1(%arg0: i32, %arg1: i32, %arg2: i32) -> (i32, i32) {
    %c0_i32 = arith.constant 0 : i32
    return %arg2, %arg1 : i32, i32
  }
  func.func @transform_2(%arg0: i32, %arg1: i32, %arg2: i32) -> (i32, i32) {
    %c0_i32 = arith.constant 0 : i32
    %c0_i32_0 = arith.constant 0 : i32
    return %c0_i32, %arg1 : i32, i32
  }
  func.func @transform_3(%arg0: i32, %arg1: i32, %arg2: i32) -> (i32, i32) {
    %c0_i32 = arith.constant 0 : i32
    return %arg0, %arg1 : i32, i32
  }
}

module attributes {stable_mosaic.version = 11 : i64} {
  func.func @matmul_bias_kernel(%arg0: i32, %arg1: i32, %arg2: i32, %arg3: memref<16x32xbf16, #tpu.memory_space<vmem>>, %arg4: memref<32x128xbf16, #tpu.memory_space<vmem>>, %arg5: memref<1x128xf32, #tpu.memory_space<vmem>>, %arg6: memref<16x128xf32, #tpu.memory_space<vmem>>, %arg7: memref<16x128xf32, #tpu.memory_space<vmem>>) attributes {dimension_semantics = [#tpu.dimension_semantics<parallel>, #tpu.dimension_semantics<parallel>, #tpu.dimension_semantics<arbitrary>], iteration_bounds = array<i64: 1, 1, 1>, scalar_prefetch = 0 : i64, scratch_operands = 1 : i64, tpu.core_type = #tpu.core_type<tc>, window_params = [{transform_indices = @transform_0, window_bounds = array<i64: 16, 32>}, {transform_indices = @transform_1, window_bounds = array<i64: 32, 128>}, {transform_indices = @transform_2, window_bounds = array<i64: 1, 128>}, {transform_indices = @transform_3, window_bounds = array<i64: 16, 128>}]} {
    %c0_i32 = arith.constant 0 : i32
    %0 = arith.cmpi eq, %arg2, %c0_i32 : i32
    %1 = arith.extui %0 : i1 to i32
    %c0_i32_0 = arith.constant 0 : i32
    %2 = arith.cmpi ne, %1, %c0_i32_0 : i32
    scf.if %2 {
      %cst_10 = arith.constant 0.000000e+00 : f32
      %12 = vector.broadcast %cst_10 : f32 to vector<16x128xf32>
      %c0_11 = arith.constant 0 : index
      %c0_12 = arith.constant 0 : index
      %13 = vector.load %arg7[%c0_11, %c0_12] : memref<16x128xf32, #tpu.memory_space<vmem>>, vector<16x128xf32>
      tpu.vector_store %arg7[%c0_11, %c0_12], %12 {strides = array<i32>} : memref<16x128xf32, #tpu.memory_space<vmem>>, vector<16x128xf32>,
    } else {
    }
    %c0 = arith.constant 0 : index
    %c0_1 = arith.constant 0 : index
    %3 = vector.load %arg7[%c0, %c0_1] : memref<16x128xf32, #tpu.memory_space<vmem>>, vector<16x128xf32>
    %c0_2 = arith.constant 0 : index
    %c0_3 = arith.constant 0 : index
    %4 = vector.load %arg3[%c0_2, %c0_3] : memref<16x32xbf16, #tpu.memory_space<vmem>>, vector<16x32xbf16>
    %c0_4 = arith.constant 0 : index
    %c0_5 = arith.constant 0 : index
    %5 = vector.load %arg4[%c0_4, %c0_5] : memref<32x128xbf16, #tpu.memory_space<vmem>>, vector<32x128xbf16>
    %cst = arith.constant dense<0.000000e+00> : vector<16x128xf32>
    %6 = tpu.matmul %4, %5, %cst {dimension_numbers = #tpu.dot_dimension_numbers<[1], [0], [0], [1], [0, 0, 1, 1], [], []>} : vector<16x32xbf16>, vector<32x128xbf16>, vector<16x128xf32> -> vector<16x128xf32>
    %7 = arith.addf %3, %6 : vector<16x128xf32>
    %c0_6 = arith.constant 0 : index
    %c0_7 = arith.constant 0 : index
    %8 = vector.load %arg7[%c0_6, %c0_7] : memref<16x128xf32, #tpu.memory_space<vmem>>, vector<16x128xf32>
    tpu.vector_store %arg7[%c0_6, %c0_7], %7 {strides = array<i32>} : memref<16x128xf32, #tpu.memory_space<vmem>>, vector<16x128xf32>,
    %c0_i32_8 = arith.constant 0 : i32
    %9 = arith.cmpi eq, %arg2, %c0_i32_8 : i32
    %10 = arith.extui %9 : i1 to i32
    %c0_i32_9 = arith.constant 0 : i32
    %11 = arith.cmpi ne, %10, %c0_i32_9 : i32
    scf.if %11 {
      %c0_10 = arith.constant 0 : index
      %c0_11 = arith.constant 0 : index
      %12 = vector.load %arg7[%c0_10, %c0_11] : memref<16x128xf32, #tpu.memory_space<vmem>>, vector<16x128xf32>
      %c0_12 = arith.constant 0 : index
      %c0_13 = arith.constant 0 : index
      %13 = vector.load %arg5[%c0_12, %c0_13] : memref<1x128xf32, #tpu.memory_space<vmem>>, vector<1x128xf32>
      %14 = vector.broadcast %13 : vector<1x128xf32> to vector<16x128xf32>
      %15 = arith.addf %12, %14 : vector<16x128xf32>
      %c0_14 = arith.constant 0 : index
      %c0_15 = arith.constant 0 : index
      %16 = vector.load %arg6[%c0_14, %c0_15] : memref<16x128xf32, #tpu.memory_space<vmem>>, vector<16x128xf32>
      tpu.vector_store %arg6[%c0_14, %c0_15], %15 {strides = array<i32>} : memref<16x128xf32, #tpu.memory_space<vmem>>, vector<16x128xf32>,
    } else {
    }
    return
  }
  func.func @transform_0(%arg0: i32, %arg1: i32, %arg2: i32) -> (i32, i32) {
    %c0_i32 = arith.constant 0 : i32
    return %arg0, %arg2 : i32, i32
  }
  func.func @transform_1(%arg0: i32, %arg1: i32, %arg2: i32) -> (i32, i32) {
    %c0_i32 = arith.constant 0 : i32
    return %arg2, %arg1 : i32, i32
  }
  func.func @transform_2(%arg0: i32, %arg1: i32, %arg2: i32) -> (i32, i32) {
    %c0_i32 = arith.constant 0 : i32
    %c0_i32_0 = arith.constant 0 : i32
    return %c0_i32, %arg1 : i32, i32
  }
  func.func @transform_3(%arg0: i32, %arg1: i32, %arg2: i32) -> (i32, i32) {
    %c0_i32 = arith.constant 0 : i32
    return %arg0, %arg1 : i32, i32
  }
}

module attributes {stable_mosaic.version = 11 : i64} {
  func.func @lstm_chunk_kernel(%arg0: i32, %arg1: memref<4x8x128xf32, #tpu.memory_space<vmem>>, %arg2: memref<8x32xf32, #tpu.memory_space<vmem>>, %arg3: memref<8x32xf32, #tpu.memory_space<vmem>>, %arg4: memref<32x128xbf16, #tpu.memory_space<vmem>>, %arg5: memref<4x8x32xf32, #tpu.memory_space<vmem>>, %arg6: memref<8x32xf32, #tpu.memory_space<vmem>>, %arg7: memref<8x32xf32, #tpu.memory_space<vmem>>, %arg8: memref<8x32xf32, #tpu.memory_space<vmem>>, %arg9: memref<8x32xf32, #tpu.memory_space<vmem>>) attributes {dimension_semantics = [#tpu.dimension_semantics<arbitrary>], iteration_bounds = array<i64: 2>, scalar_prefetch = 0 : i64, scratch_operands = 2 : i64, tpu.core_type = #tpu.core_type<tc>, window_params = [{transform_indices = @transform_0, window_bounds = array<i64: 4, 8, 128>}, {pipeline_mode = #tpu.pipeline_mode<synchronous>, transform_indices = @transform_1, window_bounds = array<i64: 8, 32>}, {pipeline_mode = #tpu.pipeline_mode<synchronous>, transform_indices = @transform_2, window_bounds = array<i64: 8, 32>}, {pipeline_mode = #tpu.pipeline_mode<synchronous>, transform_indices = @transform_3, window_bounds = array<i64: 32, 128>}, {transform_indices = @transform_4, window_bounds = array<i64: 4, 8, 32>}, {pipeline_mode = #tpu.pipeline_mode<synchronous>, transform_indices = @transform_5, window_bounds = array<i64: 8, 32>}, {pipeline_mode = #tpu.pipeline_mode<synchronous>, transform_indices = @transform_6, window_bounds = array<i64: 8, 32>}]} {
    %c0_i32 = arith.constant 0 : i32
    %0 = arith.cmpi eq, %arg0, %c0_i32 : i32
    %1 = arith.extui %0 : i1 to i32
    %c0_i32_0 = arith.constant 0 : i32
    %2 = arith.cmpi ne, %1, %c0_i32_0 : i32
    scf.if %2 {
      %c0_42 = arith.constant 0 : index
      %c0_43 = arith.constant 0 : index
      %106 = vector.load %arg2[%c0_42, %c0_43] : memref<8x32xf32, #tpu.memory_space<vmem>>, vector<8x32xf32>
      %c0_44 = arith.constant 0 : index
      %c0_45 = arith.constant 0 : index
      %107 = vector.load %arg8[%c0_44, %c0_45] : memref<8x32xf32, #tpu.memory_space<vmem>>, vector<8x32xf32>
      tpu.vector_store %arg8[%c0_44, %c0_45], %106 {strides = array<i32>} : memref<8x32xf32, #tpu.memory_space<vmem>>, vector<8x32xf32>,
      %c0_46 = arith.constant 0 : index
      %c0_47 = arith.constant 0 : index
      %108 = vector.load %arg3[%c0_46, %c0_47] : memref<8x32xf32, #tpu.memory_space<vmem>>, vector<8x32xf32>
      %c0_48 = arith.constant 0 : index
      %c0_49 = arith.constant 0 : index
      %109 = vector.load %arg9[%c0_48, %c0_49] : memref<8x32xf32, #tpu.memory_space<vmem>>, vector<8x32xf32>
      tpu.vector_store %arg9[%c0_48, %c0_49], %108 {strides = array<i32>} : memref<8x32xf32, #tpu.memory_space<vmem>>, vector<8x32xf32>,
    } else {
    }
    %c0 = arith.constant 0 : index
    %c0_1 = arith.constant 0 : index
    %3 = vector.load %arg4[%c0, %c0_1] : memref<32x128xbf16, #tpu.memory_space<vmem>>, vector<32x128xbf16>
    %c0_2 = arith.constant 0 : index
    %c0_3 = arith.constant 0 : index
    %4 = vector.load %arg8[%c0_2, %c0_3] : memref<8x32xf32, #tpu.memory_space<vmem>>, vector<8x32xf32>
    %c0_4 = arith.constant 0 : index
    %c0_5 = arith.constant 0 : index
    %5 = vector.load %arg9[%c0_4, %c0_5] : memref<8x32xf32, #tpu.memory_space<vmem>>, vector<8x32xf32>
    %c0_6 = arith.constant 0 : index
    %c0_7 = arith.constant 0 : index
    %c0_8 = arith.constant 0 : index
    %6 = vector.load %arg1[%c0_6, %c0_7, %c0_8] : memref<4x8x128xf32, #tpu.memory_space<vmem>>, vector<1x8x128xf32>
    %7 = vector.shape_cast %6 : vector<1x8x128xf32> to vector<8x128xf32>
    %8 = arith.truncf %4 : vector<8x32xf32> to vector<8x32xbf16>
    %cst = arith.constant dense<0.000000e+00> : vector<8x128xf32>
    %9 = tpu.matmul %8, %3, %cst {dimension_numbers = #tpu.dot_dimension_numbers<[1], [0], [0], [1], [0, 0, 1, 1], [], []>} : vector<8x32xbf16>, vector<32x128xbf16>, vector<8x128xf32> -> vector<8x128xf32>
    %10 = arith.addf %7, %9 : vector<8x128xf32>
    %11 = vector.extract_strided_slice %10 {offsets = [0, 0], sizes = [8, 96], strides = [1, 1]} : vector<8x128xf32> to vector<8x96xf32>
    %12 = arith.negf %11 : vector<8x96xf32>
    %13 = math.exp %12 : vector<8x96xf32>
    %cst_9 = arith.constant 1.000000e+00 : f32
    %14 = vector.broadcast %cst_9 : f32 to vector<8x96xf32>
    %15 = arith.addf %14, %13 : vector<8x96xf32>
    %16 = arith.divf %14, %15 : vector<8x96xf32>
    %17 = vector.extract_strided_slice %16 {offsets = [0, 0], sizes = [8, 32], strides = [1, 1]} : vector<8x96xf32> to vector<8x32xf32>
    %18 = vector.extract_strided_slice %16 {offsets = [0, 32], sizes = [8, 32], strides = [1, 1]} : vector<8x96xf32> to vector<8x32xf32>
    %19 = vector.extract_strided_slice %16 {offsets = [0, 64], sizes = [8, 32], strides = [1, 1]} : vector<8x96xf32> to vector<8x32xf32>
    %20 = vector.extract_strided_slice %10 {offsets = [0, 96], sizes = [8, 32], strides = [1, 1]} : vector<8x128xf32> to vector<8x32xf32>
    %21 = math.tanh %20 : vector<8x32xf32>
    %22 = arith.mulf %18, %5 : vector<8x32xf32>
    %23 = arith.mulf %17, %21 : vector<8x32xf32>
    %24 = arith.addf %22, %23 : vector<8x32xf32>
    %25 = math.tanh %24 : vector<8x32xf32>
    %26 = arith.mulf %19, %25 : vector<8x32xf32>
    %c0_10 = arith.constant 0 : index
    %c0_11 = arith.constant 0 : index
    %c0_12 = arith.constant 0 : index
    %27 = vector.load %arg5[%c0_10, %c0_11, %c0_12] : memref<4x8x32xf32, #tpu.memory_space<vmem>>, vector<1x8x32xf32>
    %28 = vector.shape_cast %27 : vector<1x8x32xf32> to vector<8x32xf32>
    %29 = vector.shape_cast %26 : vector<8x32xf32> to vector<1x8x32xf32>
    tpu.vector_store %arg5[%c0_10, %c0_11, %c0_12], %29 {strides = array<i32>} : memref<4x8x32xf32, #tpu.memory_space<vmem>>, vector<1x8x32xf32>,
    %c1 = arith.constant 1 : index
    %c0_13 = arith.constant 0 : index
    %c0_14 = arith.constant 0 : index
    %30 = vector.load %arg1[%c1, %c0_13, %c0_14] : memref<4x8x128xf32, #tpu.memory_space<vmem>>, vector<1x8x128xf32>
    %31 = vector.shape_cast %30 : vector<1x8x128xf32> to vector<8x128xf32>
    %32 = arith.truncf %26 : vector<8x32xf32> to vector<8x32xbf16>
    %cst_15 = arith.constant dense<0.000000e+00> : vector<8x128xf32>
    %33 = tpu.matmul %32, %3, %cst_15 {dimension_numbers = #tpu.dot_dimension_numbers<[1], [0], [0], [1], [0, 0, 1, 1], [], []>} : vector<8x32xbf16>, vector<32x128xbf16>, vector<8x128xf32> -> vector<8x128xf32>
    %34 = arith.addf %31, %33 : vector<8x128xf32>
    %35 = vector.extract_strided_slice %34 {offsets = [0, 0], sizes = [8, 96], strides = [1, 1]} : vector<8x128xf32> to vector<8x96xf32>
    %36 = arith.negf %35 : vector<8x96xf32>
    %37 = math.exp %36 : vector<8x96xf32>
    %cst_16 = arith.constant 1.000000e+00 : f32
    %38 = vector.broadcast %cst_16 : f32 to vector<8x96xf32>
    %39 = arith.addf %38, %37 : vector<8x96xf32>
    %40 = arith.divf %38, %39 : vector<8x96xf32>
    %41 = vector.extract_strided_slice %40 {offsets = [0, 0], sizes = [8, 32], strides = [1, 1]} : vector<8x96xf32> to vector<8x32xf32>
    %42 = vector.extract_strided_slice %40 {offsets = [0, 32], sizes = [8, 32], strides = [1, 1]} : vector<8x96xf32> to vector<8x32xf32>
    %43 = vector.extract_strided_slice %40 {offsets = [0, 64], sizes = [8, 32], strides = [1, 1]} : vector<8x96xf32> to vector<8x32xf32>
    %44 = vector.extract_strided_slice %34 {offsets = [0, 96], sizes = [8, 32], strides = [1, 1]} : vector<8x128xf32> to vector<8x32xf32>
    %45 = math.tanh %44 : vector<8x32xf32>
    %46 = arith.mulf %42, %24 : vector<8x32xf32>
    %47 = arith.mulf %41, %45 : vector<8x32xf32>
    %48 = arith.addf %46, %47 : vector<8x32xf32>
    %49 = math.tanh %48 : vector<8x32xf32>
    %50 = arith.mulf %43, %49 : vector<8x32xf32>
    %c1_17 = arith.constant 1 : index
    %c0_18 = arith.constant 0 : index
    %c0_19 = arith.constant 0 : index
    %51 = vector.load %arg5[%c1_17, %c0_18, %c0_19] : memref<4x8x32xf32, #tpu.memory_space<vmem>>, vector<1x8x32xf32>
    %52 = vector.shape_cast %51 : vector<1x8x32xf32> to vector<8x32xf32>
    %53 = vector.shape_cast %50 : vector<8x32xf32> to vector<1x8x32xf32>
    tpu.vector_store %arg5[%c1_17, %c0_18, %c0_19], %53 {strides = array<i32>} : memref<4x8x32xf32, #tpu.memory_space<vmem>>, vector<1x8x32xf32>,
    %c2 = arith.constant 2 : index
    %c0_20 = arith.constant 0 : index
    %c0_21 = arith.constant 0 : index
    %54 = vector.load %arg1[%c2, %c0_20, %c0_21] : memref<4x8x128xf32, #tpu.memory_space<vmem>>, vector<1x8x128xf32>
    %55 = vector.shape_cast %54 : vector<1x8x128xf32> to vector<8x128xf32>
    %56 = arith.truncf %50 : vector<8x32xf32> to vector<8x32xbf16>
    %cst_22 = arith.constant dense<0.000000e+00> : vector<8x128xf32>
    %57 = tpu.matmul %56, %3, %cst_22 {dimension_numbers = #tpu.dot_dimension_numbers<[1], [0], [0], [1], [0, 0, 1, 1], [], []>} : vector<8x32xbf16>, vector<32x128xbf16>, vector<8x128xf32> -> vector<8x128xf32>
    %58 = arith.addf %55, %57 : vector<8x128xf32>
    %59 = vector.extract_strided_slice %58 {offsets = [0, 0], sizes = [8, 96], strides = [1, 1]} : vector<8x128xf32> to vector<8x96xf32>
    %60 = arith.negf %59 : vector<8x96xf32>
    %61 = math.exp %60 : vector<8x96xf32>
    %cst_23 = arith.constant 1.000000e+00 : f32
    %62 = vector.broadcast %cst_23 : f32 to vector<8x96xf32>
    %63 = arith.addf %62, %61 : vector<8x96xf32>
    %64 = arith.divf %62, %63 : vector<8x96xf32>
    %65 = vector.extract_strided_slice %64 {offsets = [0, 0], sizes = [8, 32], strides = [1, 1]} : vector<8x96xf32> to vector<8x32xf32>
    %66 = vector.extract_strided_slice %64 {offsets = [0, 32], sizes = [8, 32], strides = [1, 1]} : vector<8x96xf32> to vector<8x32xf32>
    %67 = vector.extract_strided_slice %64 {offsets = [0, 64], sizes = [8, 32], strides = [1, 1]} : vector<8x96xf32> to vector<8x32xf32>
    %68 = vector.extract_strided_slice %58 {offsets = [0, 96], sizes = [8, 32], strides = [1, 1]} : vector<8x128xf32> to vector<8x32xf32>
    %69 = math.tanh %68 : vector<8x32xf32>
    %70 = arith.mulf %66, %48 : vector<8x32xf32>
    %71 = arith.mulf %65, %69 : vector<8x32xf32>
    %72 = arith.addf %70, %71 : vector<8x32xf32>
    %73 = math.tanh %72 : vector<8x32xf32>
    %74 = arith.mulf %67, %73 : vector<8x32xf32>
    %c2_24 = arith.constant 2 : index
    %c0_25 = arith.constant 0 : index
    %c0_26 = arith.constant 0 : index
    %75 = vector.load %arg5[%c2_24, %c0_25, %c0_26] : memref<4x8x32xf32, #tpu.memory_space<vmem>>, vector<1x8x32xf32>
    %76 = vector.shape_cast %75 : vector<1x8x32xf32> to vector<8x32xf32>
    %77 = vector.shape_cast %74 : vector<8x32xf32> to vector<1x8x32xf32>
    tpu.vector_store %arg5[%c2_24, %c0_25, %c0_26], %77 {strides = array<i32>} : memref<4x8x32xf32, #tpu.memory_space<vmem>>, vector<1x8x32xf32>,
    %c3 = arith.constant 3 : index
    %c0_27 = arith.constant 0 : index
    %c0_28 = arith.constant 0 : index
    %78 = vector.load %arg1[%c3, %c0_27, %c0_28] : memref<4x8x128xf32, #tpu.memory_space<vmem>>, vector<1x8x128xf32>
    %79 = vector.shape_cast %78 : vector<1x8x128xf32> to vector<8x128xf32>
    %80 = arith.truncf %74 : vector<8x32xf32> to vector<8x32xbf16>
    %cst_29 = arith.constant dense<0.000000e+00> : vector<8x128xf32>
    %81 = tpu.matmul %80, %3, %cst_29 {dimension_numbers = #tpu.dot_dimension_numbers<[1], [0], [0], [1], [0, 0, 1, 1], [], []>} : vector<8x32xbf16>, vector<32x128xbf16>, vector<8x128xf32> -> vector<8x128xf32>
    %82 = arith.addf %79, %81 : vector<8x128xf32>
    %83 = vector.extract_strided_slice %82 {offsets = [0, 0], sizes = [8, 96], strides = [1, 1]} : vector<8x128xf32> to vector<8x96xf32>
    %84 = arith.negf %83 : vector<8x96xf32>
    %85 = math.exp %84 : vector<8x96xf32>
    %cst_30 = arith.constant 1.000000e+00 : f32
    %86 = vector.broadcast %cst_30 : f32 to vector<8x96xf32>
    %87 = arith.addf %86, %85 : vector<8x96xf32>
    %88 = arith.divf %86, %87 : vector<8x96xf32>
    %89 = vector.extract_strided_slice %88 {offsets = [0, 0], sizes = [8, 32], strides = [1, 1]} : vector<8x96xf32> to vector<8x32xf32>
    %90 = vector.extract_strided_slice %88 {offsets = [0, 32], sizes = [8, 32], strides = [1, 1]} : vector<8x96xf32> to vector<8x32xf32>
    %91 = vector.extract_strided_slice %88 {offsets = [0, 64], sizes = [8, 32], strides = [1, 1]} : vector<8x96xf32> to vector<8x32xf32>
    %92 = vector.extract_strided_slice %82 {offsets = [0, 96], sizes = [8, 32], strides = [1, 1]} : vector<8x128xf32> to vector<8x32xf32>
    %93 = math.tanh %92 : vector<8x32xf32>
    %94 = arith.mulf %90, %72 : vector<8x32xf32>
    %95 = arith.mulf %89, %93 : vector<8x32xf32>
    %96 = arith.addf %94, %95 : vector<8x32xf32>
    %97 = math.tanh %96 : vector<8x32xf32>
    %98 = arith.mulf %91, %97 : vector<8x32xf32>
    %c3_31 = arith.constant 3 : index
    %c0_32 = arith.constant 0 : index
    %c0_33 = arith.constant 0 : index
    %99 = vector.load %arg5[%c3_31, %c0_32, %c0_33] : memref<4x8x32xf32, #tpu.memory_space<vmem>>, vector<1x8x32xf32>
    %100 = vector.shape_cast %99 : vector<1x8x32xf32> to vector<8x32xf32>
    %101 = vector.shape_cast %98 : vector<8x32xf32> to vector<1x8x32xf32>
    tpu.vector_store %arg5[%c3_31, %c0_32, %c0_33], %101 {strides = array<i32>} : memref<4x8x32xf32, #tpu.memory_space<vmem>>, vector<1x8x32xf32>,
    %c0_34 = arith.constant 0 : index
    %c0_35 = arith.constant 0 : index
    %102 = vector.load %arg8[%c0_34, %c0_35] : memref<8x32xf32, #tpu.memory_space<vmem>>, vector<8x32xf32>
    tpu.vector_store %arg8[%c0_34, %c0_35], %98 {strides = array<i32>} : memref<8x32xf32, #tpu.memory_space<vmem>>, vector<8x32xf32>,
    %c0_36 = arith.constant 0 : index
    %c0_37 = arith.constant 0 : index
    %103 = vector.load %arg9[%c0_36, %c0_37] : memref<8x32xf32, #tpu.memory_space<vmem>>, vector<8x32xf32>
    tpu.vector_store %arg9[%c0_36, %c0_37], %96 {strides = array<i32>} : memref<8x32xf32, #tpu.memory_space<vmem>>, vector<8x32xf32>,
    %c0_38 = arith.constant 0 : index
    %c0_39 = arith.constant 0 : index
    %104 = vector.load %arg6[%c0_38, %c0_39] : memref<8x32xf32, #tpu.memory_space<vmem>>, vector<8x32xf32>
    tpu.vector_store %arg6[%c0_38, %c0_39], %98 {strides = array<i32>} : memref<8x32xf32, #tpu.memory_space<vmem>>, vector<8x32xf32>,
    %c0_40 = arith.constant 0 : index
    %c0_41 = arith.constant 0 : index
    %105 = vector.load %arg7[%c0_40, %c0_41] : memref<8x32xf32, #tpu.memory_space<vmem>>, vector<8x32xf32>
    tpu.vector_store %arg7[%c0_40, %c0_41], %96 {strides = array<i32>} : memref<8x32xf32, #tpu.memory_space<vmem>>, vector<8x32xf32>,
    return
  }
  func.func @transform_0(%arg0: i32) -> (i32, i32, i32) {
    %c0_i32 = arith.constant 0 : i32
    %c0_i32_0 = arith.constant 0 : i32
    %c0_i32_1 = arith.constant 0 : i32
    return %arg0, %c0_i32, %c0_i32_0 : i32, i32, i32
  }
  func.func @transform_1(%arg0: i32) -> (i32, i32) {
    %c0_i32 = arith.constant 0 : i32
    %c0_i32_0 = arith.constant 0 : i32
    %c0_i32_1 = arith.constant 0 : i32
    return %c0_i32, %c0_i32_0 : i32, i32
  }
  func.func @transform_2(%arg0: i32) -> (i32, i32) {
    %c0_i32 = arith.constant 0 : i32
    %c0_i32_0 = arith.constant 0 : i32
    %c0_i32_1 = arith.constant 0 : i32
    return %c0_i32, %c0_i32_0 : i32, i32
  }
  func.func @transform_3(%arg0: i32) -> (i32, i32) {
    %c0_i32 = arith.constant 0 : i32
    %c0_i32_0 = arith.constant 0 : i32
    %c0_i32_1 = arith.constant 0 : i32
    return %c0_i32, %c0_i32_0 : i32, i32
  }
  func.func @transform_4(%arg0: i32) -> (i32, i32, i32) {
    %c0_i32 = arith.constant 0 : i32
    %c0_i32_0 = arith.constant 0 : i32
    %c0_i32_1 = arith.constant 0 : i32
    return %arg0, %c0_i32, %c0_i32_0 : i32, i32, i32
  }
  func.func @transform_5(%arg0: i32) -> (i32, i32) {
    %c0_i32 = arith.constant 0 : i32
    %c0_i32_0 = arith.constant 0 : i32
    %c0_i32_1 = arith.constant 0 : i32
    return %c0_i32, %c0_i32_0 : i32, i32
  }
  func.func @transform_6(%arg0: i32) -> (i32, i32) {
    %c0_i32 = arith.constant 0 : i32
    %c0_i32_0 = arith.constant 0 : i32
    %c0_i32_1 = arith.constant 0 : i32
    return %c0_i32, %c0_i32_0 : i32, i32
  }
}

</mosaic_0001>

<llo_original>
// kernel: recurrent_decoder2_forward.5
$region0: #{recurrent_decoder2_forward.5}
  #allocation0 [shape = 'u32[]', space=smem, size = 0x4, offset = 0x4, fixed_abs, tag = 'smem constant byte address 0x4 - core index']
  #allocation1 [shape = 'u32[144,128]{1,0:T(1,128)}', space=vmem, size = 0x12000, scoped, tag = 'internal scratch']
  #allocation2 [shape = 'f32[16,128]{1,0:T(8,128)}', space=vmem, size = 0x2000, scoped, tag = 'scratch operand']
  %s0 = inlined_call_operand.vmem [shape: bf16[16,32], index: 0, kind: input, shape index: {}]
  %s1 = inlined_call_operand.vmem [shape: bf16[32,128], index: 1, kind: input, shape index: {}]
  %s2 = inlined_call_operand.vmem [shape: f32[1,128], index: 2, kind: input, shape index: {}]
  %s3 = inlined_call_operand.vmem [shape: f32[16,128], index: 3, kind: output, shape index: {}]
  %s4 = sld [smem:[#allocation0]]
  $region30: #{recurrent_decoder2_forward.5} parent=0
    _
  %s6 = ssub.s32 1, %s4
  %s7 = scalar_select 0, %s6, %s4
  // Predicated region
  $region2: #{recurrent_decoder2_forward.5} parent=0 // pred_check
    _
  $region3: #{recurrent_decoder2_forward.5} parent=0 // pred_check_branch
    %9 = sbr.rel (0) target = $region5
  $region4: #{recurrent_decoder2_forward.5} parent=0 // pred_region
    _
  $region5: #{recurrent_decoder2_forward.5} parent=0 // pred_fallthru
    _
  // Predicated region
  $region6: #{recurrent_decoder2_forward.5} parent=0 // pred_check
    _
  $region7: #{recurrent_decoder2_forward.5} parent=0 // pred_check_branch
    %11 = sbr.rel (0) target = $region9
  $region8: #{recurrent_decoder2_forward.5} parent=0 // pred_region
    _
  $region9: #{recurrent_decoder2_forward.5} parent=0 // pred_fallthru
    _
  // Predicated region
  $region10: #{recurrent_decoder2_forward.5} parent=0 // pred_check
    _
  $region11: #{recurrent_decoder2_forward.5} parent=0 // pred_check_branch
    %13 = sbr.rel (0) target = $region13
  $region12: #{recurrent_decoder2_forward.5} parent=0 // pred_region
    _
  $region13: #{recurrent_decoder2_forward.5} parent=0 // pred_fallthru
    _
  %p15 = scmp.eq.s32.totalorder 0, 0
  // Predicated region
  $region14: #{recurrent_decoder2_forward.5} parent=0 // pred_check
    %p16 = pneg %p15
  $region15: #{recurrent_decoder2_forward.5} parent=0 // pred_check_branch
    %18 = sbr.rel (%p16) target = $region17
  $region16: #{recurrent_decoder2_forward.5} parent=0 // pred_region
    %19 = vst [vmem:[#allocation2] sm:$0xff] 0.0
    %20 = vst [vmem:[#allocation2 + $0x8] sm:$0xff] 0.0
  $region17: #{recurrent_decoder2_forward.5} parent=0 // pred_fallthru
    _
  %v21 = vld [vmem:[#allocation2] sm:$0xff]
  %v22 = vld [vmem:[#allocation2 + $0x8] sm:$0xff]
  %v23 = vld [vmem:[%s0] sm:$0xf]
  %v24 = vld [vmem:[%s0 + $0x4] sm:$0xf]
  %v25 = vld [vmem:[%s1] sm:$0xf]
  %v26 = vld [vmem:[%s1 + $0x4] sm:$0xf]
  %v27 = vld [vmem:[%s1 + $0x8] sm:$0xf]
  %v28 = vld [vmem:[%s1 + $0xc] sm:$0xf]
  %v31 = vunpack.c.l.b16 %v23
  %v32 = vunpack.c.l.b16 %v24
  %v33 = vpack.c.b16 %v32, %v31
  %v38 = vunpack.c.l.b16 %v25
  %v39 = vunpack.c.l.b16 %v26
  %v40 = vunpack.c.l.b16 %v27
  %v41 = vunpack.c.l.b16 %v28
  %v42 = vpack.c.b16 %v39, %v38
  %v43 = vpack.c.b16 %v41, %v40
  %vm46 = vcmask 261120
  %v48 = vsel %vm46, %v33, 0
  %50 = vmatprep.subr.bf16.mxu0 0
  %51 = vmatpush1.bf16.msra.mxu0 %v42
  %52 = vmatprep.subr.bf16.mxu0 0
  %53 = vmatpush1.bf16.msra.mxu0 %v43
  %54 = vmatprep.subr.bf16.mxu0 0
  %55 = vmatpush1.bf16.msra.mxu0 0
  %56 = vmatprep.subr.bf16.mxu0 0
  %57 = vmatpush1.bf16.msra.mxu0 0
  %58 = vmatprep.subr.bf16.mxu0 0
  %59 = vmatpush1.bf16.msra.mxu0 0
  %60 = vmatprep.subr.bf16.mxu0 0
  %61 = vmatpush1.bf16.msra.mxu0 0
  %62 = vmatprep.subr.bf16.mxu0 0
  %63 = vmatpush1.bf16.msra.mxu0 0
  %64 = vmatprep.subr.bf16.mxu0 0
  %65 = vmatpush1.bf16.msra.mxu0 0
  %66 = vmatprep.subr.bf16.mxu0 0
  %67 = vmatpush1.bf16.msra.mxu0 0
  %68 = vmatprep.subr.bf16.mxu0 0
  %69 = vmatpush1.bf16.msra.mxu0 0
  %70 = vmatprep.subr.bf16.mxu0 0
  %71 = vmatpush1.bf16.msra.mxu0 0
  %72 = vmatprep.subr.bf16.mxu0 0
  %73 = vmatpush1.bf16.msra.mxu0 0
  %74 = vmatprep.subr.bf16.mxu0 0
  %75 = vmatpush1.bf16.msra.mxu0 0
  %76 = vmatprep.subr.bf16.mxu0 0
  %77 = vmatpush1.bf16.msra.mxu0 0
  %78 = vmatprep.subr.bf16.mxu0 0
  %79 = vmatpush1.bf16.msra.mxu0 0
  %80 = vmatprep.subr.bf16.mxu0 0
  %81 = vmatpush1.bf16.msra.mxu0 0
  %82 = vmatprep.mubr.bf16.mxu0 0
  %83 = vmatmul.mubr.bf16.gmra.mrb[0].mxu0 %v48
  %v84 = vpop.f32.mrb[0].mxu0
  %v85 = vadd.f32 0.0, %v84
  %v86 = vpop.f32.mrb[0].mxu0
  %v87 = vpop.f32.mrb[0].mxu0
  %v88 = vadd.f32 0.0, %v87
  %v89 = vpop.f32.mrb[0].mxu0
  %90 = vdwg.mxu0
  %v91 = vadd.f32 %v21, %v85
  %v92 = vadd.f32 %v22, %v88
  %93 = vst [vmem:[#allocation2] sm:$0xff] %v91
  %94 = vst [vmem:[#allocation2 + $0x8] sm:$0xff] %v92
  // Predicated region
  $region18: #{recurrent_decoder2_forward.5} parent=0 // pred_check
    %p95 = pneg %p15
  $region19: #{recurrent_decoder2_forward.5} parent=0 // pred_check_branch
    %97 = sbr.rel (%p95) target = $region21
  $region20: #{recurrent_decoder2_forward.5} parent=0 // pred_region
    %v98 = vld [vmem:[#allocation2] sm:$0xff]
    %v99 = vld [vmem:[#allocation2 + $0x8] sm:$0xff]
    %v100 = vld [vmem:[%s2] sm:$0x1]
    %v102 = vlaneseq
    %v103 = vshrl.u32 %v102, 7
    %v104 = vsub.s32 0, %v103
    %v105 = vrot.slane %v100, %v104
    %v107 = vadd.f32 %v98, %v105
    %v108 = vadd.f32 %v99, %v105
    %109 = vst [vmem:[%s3] sm:$0xff] %v107
    %110 = vst [vmem:[%s3 + $0x8] sm:$0xff] %v108
  $region21: #{recurrent_decoder2_forward.5} parent=0 // pred_fallthru
    _
  // Predicated region
  $region22: #{recurrent_decoder2_forward.5} parent=0 // pred_check
    _
  $region23: #{recurrent_decoder2_forward.5} parent=0 // pred_check_branch
    %112 = sbr.rel (0) target = $region25
  $region24: #{recurrent_decoder2_forward.5} parent=0 // pred_region
    _
  $region25: #{recurrent_decoder2_forward.5} parent=0 // pred_fallthru
    _
  // Predicated region
  $region26: #{recurrent_decoder2_forward.5} parent=0 // pred_check
    _
  $region27: #{recurrent_decoder2_forward.5} parent=0 // pred_check_branch
    %114 = sbr.rel (0) target = $region29
  $region28: #{recurrent_decoder2_forward.5} parent=0 // pred_region
    _
  $region29: #{recurrent_decoder2_forward.5} parent=0 // pred_fallthru
    _

// kernel: recurrent_decoder2_forward.4
$region0: #{recurrent_decoder2_forward.4}
  #allocation0 [shape = 'u32[]', space=smem, size = 0x4, offset = 0x4, fixed_abs, tag = 'smem constant byte address 0x4 - core index']
  #allocation1 [shape = 'u32[144,128]{1,0:T(1,128)}', space=vmem, size = 0x12000, scoped, tag = 'internal scratch']
  #allocation2 [shape = 'f32[8,32]{1,0:T(8,128)}', space=vmem, size = 0x1000, scoped, tag = 'scratch operand']
  #allocation3 [shape = 'f32[8,32]{1,0:T(8,128)}', space=vmem, size = 0x1000, scoped, tag = 'scratch operand']
  %s0 = inlined_call_operand.vmem [shape: f32[8,8,128], index: 0, kind: input, shape index: {}]
  %s1 = inlined_call_operand.vmem [shape: f32[8,32], index: 1, kind: input, shape index: {}]
  %s2 = inlined_call_operand.vmem [shape: f32[8,32], index: 2, kind: input, shape index: {}]
  %s3 = inlined_call_operand.vmem [shape: bf16[32,128], index: 3, kind: input, shape index: {}]
  %s4 = inlined_call_operand.vmem [shape: f32[8,8,32], index: 4, kind: output, shape index: {0}]
  %s5 = inlined_call_operand.vmem [shape: f32[8,32], index: 5, kind: output, shape index: {1}]
  %s6 = inlined_call_operand.vmem [shape: f32[8,32], index: 6, kind: output, shape index: {2}]
  %7 = xla_tuple %s4, %s5, %s6
  %s8 = sld [smem:[#allocation0]]
  $region69: #{recurrent_decoder2_forward.4} parent=0
    _
  %s10 = ssub.s32 1, %s8
  %s11 = scalar_select 0, %s10, %s8
  loop: start=0, step=1, limit=4
  $region2: #{recurrent_decoder2_forward.4} parent=0 // loop_pre_header
    _
  $region3: #{recurrent_decoder2_forward.4} parent=0 // loop_header
    %s13 = sphi 0, %s17
    %p14 = scmp.ge.s32.totalorder %s13, 4
    %s23 = sphi 0, %s25
    %s26 = sphi 0, %s23
    %s27 = sphi 0, %s26
    %s43 = sphi 0, %s27
    %s47 = sphi 0, %s47
    %s49 = sphi 0, %s47
    %s50 = sphi 0, %s49
    %s64 = sphi 0, %s50
    %s68 = sphi 0, %s68
    %s70 = sphi 0, %s68
    %s71 = sphi 0, %s70
    %s85 = sphi 0, %s71
    %s89 = sphi 0, %s89
    %s91 = sphi 0, %s89
    %s92 = sphi 0, %s91
    %s106 = sphi 0, %s92
    %s112 = sphi 0, %s114
    %s115 = sphi 0, %s112
    %s116 = sphi 0, %s115
    %s132 = sphi 0, %s116
    %s136 = sphi 0, %s136
    %s138 = sphi 0, %s136
    %s139 = sphi 0, %s138
    %s153 = sphi 0, %s139
    %s157 = sphi 0, %s157
    %s159 = sphi 0, %s157
    %s160 = sphi 0, %s159
    %s174 = sphi 0, %s160
  $region4: #{recurrent_decoder2_forward.4} parent=0 // loop_header_branch
    %16 = sbr.rel (%p14) target = $region8
  $region5: #{recurrent_decoder2_forward.4} parent=0 // loop_body
    %s18 = ssub.s32 %s13, 1
    %s19 = ssub.s32 %s13, 2
    %s20 = sadd.s32 %s13, 1
    %s21 = ssub.s32 %s13, %s20
    %p22 = scmp.eq.s32.totalorder %s21, 0
    %s24 = sadd.s32 %s23, 1
    %s25 = scalar_select %p22, %s23, %s24
    %p28 = pneg %p22
    %p29 = scmp.eq.s32.totalorder %s13, 1
    %p30 = por %p28, %p29
    %p31 = scmp.ne.s32.totalorder %s23, %s26
    %p32 = scmp.eq.s32.totalorder %s13, 0
    %p33 = por %p31, %p32
    %p34 = scmp.ne.s32.totalorder %s23, %s26
    %p35 = scmp.eq.s32.totalorder %s18, 1
    %p36 = por %p34, %p35
    %p37 = scmp.ne.s32.totalorder %s26, %s27
    %p38 = scmp.eq.s32.totalorder %s18, 0
    %p39 = por %p37, %p38
    %p40 = scmp.ne.s32.totalorder %s26, %s27
    %p41 = scmp.eq.s32.totalorder %s19, 1
    %p42 = por %p40, %p41
    %p44 = scmp.ne.s32.totalorder %s27, %s43
    %p45 = scmp.eq.s32.totalorder %s19, 0
    %p46 = por %p44, %p45
    %s48 = sadd.s32 %s47, 1
    %p51 = scmp.eq.s32.totalorder %s13, 1
    %p52 = scmp.ne.s32.totalorder %s47, %s49
    %p53 = scmp.eq.s32.totalorder %s13, 0
    %p54 = por %p52, %p53
    %p55 = scmp.ne.s32.totalorder %s47, %s49
    %p56 = scmp.eq.s32.totalorder %s18, 1
    %p57 = por %p55, %p56
    %p58 = scmp.ne.s32.totalorder %s49, %s50
    %p59 = scmp.eq.s32.totalorder %s18, 0
    %p60 = por %p58, %p59
    %p61 = scmp.ne.s32.totalorder %s49, %s50
    %p62 = scmp.eq.s32.totalorder %s19, 1
    %p63 = por %p61, %p62
    %p65 = scmp.ne.s32.totalorder %s50, %s64
    %p66 = scmp.eq.s32.totalorder %s19, 0
    %p67 = por %p65, %p66
    %s69 = sadd.s32 %s68, 1
    %p72 = scmp.eq.s32.totalorder %s13, 1
    %p73 = scmp.ne.s32.totalorder %s68, %s70
    %p74 = scmp.eq.s32.totalorder %s13, 0
    %p75 = por %p73, %p74
    %p76 = scmp.ne.s32.totalorder %s68, %s70
    %p77 = scmp.eq.s32.totalorder %s18, 1
    %p78 = por %p76, %p77
    %p79 = scmp.ne.s32.totalorder %s70, %s71
    %p80 = scmp.eq.s32.totalorder %s18, 0
    %p81 = por %p79, %p80
    %p82 = scmp.ne.s32.totalorder %s70, %s71
    %p83 = scmp.eq.s32.totalorder %s19, 1
    %p84 = por %p82, %p83
    %p86 = scmp.ne.s32.totalorder %s71, %s85
    %p87 = scmp.eq.s32.totalorder %s19, 0
    %p88 = por %p86, %p87
    %s90 = sadd.s32 %s89, 1
    %p93 = scmp.eq.s32.totalorder %s13, 1
    %p94 = scmp.ne.s32.totalorder %s89, %s91
    %p95 = scmp.eq.s32.totalorder %s13, 0
    %p96 = por %p94, %p95
    %p97 = scmp.ne.s32.totalorder %s89, %s91
    %p98 = scmp.eq.s32.totalorder %s18, 1
    %p99 = por %p97, %p98
    %p100 = scmp.ne.s32.totalorder %s91, %s92
    %p101 = scmp.eq.s32.totalorder %s18, 0
    %p102 = por %p100, %p101
    %p103 = scmp.ne.s32.totalorder %s91, %s92
    %p104 = scmp.eq.s32.totalorder %s19, 1
    %p105 = por %p103, %p104
    %p107 = scmp.ne.s32.totalorder %s92, %s106
    %p108 = scmp.eq.s32.totalorder %s19, 0
    %p109 = por %p107, %p108
    %s110 = ssub.s32 %s13, %s20
    %p111 = scmp.eq.s32.totalorder %s110, 0
    %s113 = sadd.s32 %s112, 1
    %s114 = scalar_select %p111, %s112, %s113
    %p117 = pneg %p111
    %p118 = scmp.eq.s32.totalorder %s13, 1
    %p119 = por %p117, %p118
    %p120 = scmp.ne.s32.totalorder %s112, %s115
    %p121 = scmp.eq.s32.totalorder %s13, 0
    %p122 = por %p120, %p121
    %p123 = scmp.ne.s32.totalorder %s112, %s115
    %p124 = scmp.eq.s32.totalorder %s18, 1
    %p125 = por %p123, %p124
    %p126 = scmp.ne.s32.totalorder %s115, %s116
    %p127 = scmp.eq.s32.totalorder %s18, 0
    %p128 = por %p126, %p127
    %p129 = scmp.ne.s32.totalorder %s115, %s116
    %p130 = scmp.eq.s32.totalorder %s19, 1
    %p131 = por %p129, %p130
    %p133 = scmp.ne.s32.totalorder %s116, %s132
    %p134 = scmp.eq.s32.totalorder %s19, 0
    %p135 = por %p133, %p134
    %s137 = sadd.s32 %s136, 1
    %p140 = scmp.eq.s32.totalorder %s13, 1
    %p141 = scmp.ne.s32.totalorder %s136, %s138
    %p142 = scmp.eq.s32.totalorder %s13, 0
    %p143 = por %p141, %p142
    %p144 = scmp.ne.s32.totalorder %s136, %s138
    %p145 = scmp.eq.s32.totalorder %s18, 1
    %p146 = por %p144, %p145
    %p147 = scmp.ne.s32.totalorder %s138, %s139
    %p148 = scmp.eq.s32.totalorder %s18, 0
    %p149 = por %p147, %p148
    %p150 = scmp.ne.s32.totalorder %s138, %s139
    %p151 = scmp.eq.s32.totalorder %s19, 1
    %p152 = por %p150, %p151
    %p154 = scmp.ne.s32.totalorder %s139, %s153
    %p155 = scmp.eq.s32.totalorder %s19, 0
    %p156 = por %p154, %p155
    %s158 = sadd.s32 %s157, 1
    %p161 = scmp.eq.s32.totalorder %s13, 1
    %p162 = scmp.ne.s32.totalorder %s157, %s159
    %p163 = scmp.eq.s32.totalorder %s13, 0
    %p164 = por %p162, %p163
    %p165 = scmp.ne.s32.totalorder %s157, %s159
    %p166 = scmp.eq.s32.totalorder %s18, 1
    %p167 = por %p165, %p166
    %p168 = scmp.ne.s32.totalorder %s159, %s160
    %p169 = scmp.eq.s32.totalorder %s18, 0
    %p170 = por %p168, %p169
    %p171 = scmp.ne.s32.totalorder %s159, %s160
    %p172 = scmp.eq.s32.totalorder %s19, 1
    %p173 = por %p171, %p172
    %p175 = scmp.ne.s32.totalorder %s160, %s174
    %p176 = scmp.eq.s32.totalorder %s19, 0
    %p177 = por %p175, %p176
    %p178 = scmp.le.s32.totalorder 1, %s13
    %p179 = scmp.lt.s32.totalorder %s13, 3
    %p180 = pnand %p178, %p179
    %p181 = pneg %p180
    // Predicated region
    $region9: #{recurrent_decoder2_forward.4} parent=5 // pred_check
      _
    $region10: #{recurrent_decoder2_forward.4} parent=5 // pred_check_branch
      %183 = sbr.rel (%p180) target = $region12
    $region11: #{recurrent_decoder2_forward.4} parent=5 // pred_region
      %s184 = ssub.s32 %s13, 1
      // Predicated region
      $region13: #{recurrent_decoder2_forward.4} parent=11 // pred_check
        %p185 = pneg %p60
      $region14: #{recurrent_decoder2_forward.4} parent=11 // pred_check_branch
        %187 = sbr.rel (%p185) target = $region16
      $region15: #{recurrent_decoder2_forward.4} parent=11 // pred_region
        _
      $region16: #{recurrent_decoder2_forward.4} parent=11 // pred_fallthru
        _
      // Predicated region
      $region17: #{recurrent_decoder2_forward.4} parent=11 // pred_check
        %p188 = pneg %p81
      $region18: #{recurrent_decoder2_forward.4} parent=11 // pred_check_branch
        %190 = sbr.rel (%p188) target = $region20
      $region19: #{recurrent_decoder2_forward.4} parent=11 // pred_region
        _
      $region20: #{recurrent_decoder2_forward.4} parent=11 // pred_fallthru
        _
      // Predicated region
      $region21: #{recurrent_decoder2_forward.4} parent=11 // pred_check
        %p191 = pneg %p102
      $region22: #{recurrent_decoder2_forward.4} parent=11 // pred_check_branch
        %193 = sbr.rel (%p191) target = $region24
      $region23: #{recurrent_decoder2_forward.4} parent=11 // pred_region
        _
      $region24: #{recurrent_decoder2_forward.4} parent=11 // pred_fallthru
        _
    $region12: #{recurrent_decoder2_forward.4} parent=5 // pred_fallthru
      _
    %p194 = scmp.lt.s32.totalorder %s13, 2
    // Predicated region
    $region25: #{recurrent_decoder2_forward.4} parent=5 // pred_check
      %p195 = pneg %p194
    $region26: #{recurrent_decoder2_forward.4} parent=5 // pred_check_branch
      %197 = sbr.rel (%p195) target = $region28
    $region27: #{recurrent_decoder2_forward.4} parent=5 // pred_region
      // Predicated region
      $region29: #{recurrent_decoder2_forward.4} parent=27 // pred_check
        %p198 = pneg %p33
      $region30: #{recurrent_decoder2_forward.4} parent=27 // pred_check_branch
        %200 = sbr.rel (%p198) target = $region32
      $region31: #{recurrent_decoder2_forward.4} parent=27 // pred_region
        %s201 = smul.u32 4, %s13
        %p202 = scmp.lt.s32.totalorder %s201, 7
        %s203 = scalar_select %p202, %s201, 7
        %s204 = smul.addr %s203, 8
        %s205 = scalar_lea.vmem %s0, %s204
        %s206 = smul.u32 4, %s13
      $region32: #{recurrent_decoder2_forward.4} parent=27 // pred_fallthru
        _
    $region28: #{recurrent_decoder2_forward.4} parent=5 // pred_fallthru
      _
    %p207 = scmp.le.s32.totalorder 1, %s13
    %p208 = scmp.lt.s32.totalorder %s13, 3
    %p209 = pnand %p207, %p208
    %p210 = pneg %p209
    // Predicated region
    $region33: #{recurrent_decoder2_forward.4} parent=5 // pred_check
      _
    $region34: #{recurrent_decoder2_forward.4} parent=5 // pred_check_branch
      %212 = sbr.rel (%p209) target = $region36
    $region35: #{recurrent_decoder2_forward.4} parent=5 // pred_region
      %s213 = ssub.s32 %s13, 1
      %s214 = smul.u32 4, %s18
      %p215 = scmp.lt.s32.totalorder %s214, 7
      %s216 = scalar_select %p215, %s214, 7
      %s217 = smul.addr %s216, 8
      %s218 = scalar_lea.vmem %s0, %s217
      %p219 = pneg %p39
      %p220 = pneg %p36
      %p221 = pneg %p60
      %p222 = pneg %p57
      %p223 = pneg %p81
      %p224 = pneg %p78
      %p225 = pneg %p102
      %p226 = pneg %p99
      %p227 = pneg %p128
      %p228 = pneg %p125
      %s229 = smul.u32 4, %s18
      %p230 = scmp.lt.s32.totalorder %s229, 7
      %s231 = scalar_select %p230, %s229, 7
      %s232 = smul.addr %s231, 8
      %s233 = scalar_lea.vmem %s4, %s232
      %p234 = pneg %p149
      %p235 = pneg %p146
      %p236 = pneg %p170
      %p237 = pneg %p167
      %s238 = smul.u32 4, %s18
      %p239 = scmp.lt.s32.totalorder %s238, 7
      %s240 = scalar_select %p239, %s238, 7
      %s241 = smul.addr %s240, 8
      %s242 = scalar_lea.vmem %s0, %s241
      %s243 = smul.u32 4, %s18
      %s244 = smul.u32 4, %s18
      %p245 = scmp.lt.s32.totalorder %s244, 7
      %s246 = scalar_select %p245, %s244, 7
      %s247 = smul.addr %s246, 8
      %s248 = scalar_lea.vmem %s4, %s247
      %s249 = smul.u32 4, %s18
      %p251 = scmp.eq.s32.totalorder %s18, 0
      // Predicated region
      $region37: #{recurrent_decoder2_forward.4} parent=35 // pred_check
        %p252 = pneg %p251
      $region38: #{recurrent_decoder2_forward.4} parent=35 // pred_check_branch
        %254 = sbr.rel (%p252) target = $region40
      $region39: #{recurrent_decoder2_forward.4} parent=35 // pred_region
        %v255 = vld [vmem:[%s1] sm:$0xff]
        %vm256 = vcmask 261120
        %257 = vst.msk [vmem:[#allocation2] sm:$0xff] %vm256, %v255
        %v258 = vld [vmem:[%s2] sm:$0xff]
        %259 = vst.msk [vmem:[#allocation3] sm:$0xff] %vm256, %v258
      $region40: #{recurrent_decoder2_forward.4} parent=35 // pred_fallthru
        _
      %v260 = vld [vmem:[%s3] sm:$0xf]
      %v261 = vld [vmem:[%s3 + $0x4] sm:$0xf]
      %v262 = vld [vmem:[%s3 + $0x8] sm:$0xf]
      %v263 = vld [vmem:[%s3 + $0xc] sm:$0xf]
      %v264 = vld [vmem:[#allocation2] sm:$0xff]
      %v265 = vld [vmem:[#allocation3] sm:$0xff]
      %v266 = vld [vmem:[%s242] sm:$0xff]
      %v267 = vpack.c.bf16 %v264, %v264
      %v272 = vunpack.c.l.b16 %v260
      %v273 = vunpack.c.l.b16 %v261
      %v274 = vunpack.c.l.b16 %v262
      %v275 = vunpack.c.l.b16 %v263
      %v276 = vpack.c.b16 %v273, %v272
      %v277 = vpack.c.b16 %v275, %v274
      %vm280 = vcmask 261120
      %v282 = vsel %vm280, %v267, 0
      %284 = vmatprep.subr.bf16.mxu0 0
      %285 = vmatpush1.bf16.msra.mxu0 %v276
      %286 = vmatprep.subr.bf16.mxu0 0
      %287 = vmatpush1.bf16.msra.mxu0 %v277
      %288 = vmatprep.subr.bf16.mxu0 0
      %289 = vmatpush1.bf16.msra.mxu0 0
      %290 = vmatprep.subr.bf16.mxu0 0
      %291 = vmatpush1.bf16.msra.mxu0 0
      %292 = vmatprep.subr.bf16.mxu0 0
      %293 = vmatpush1.bf16.msra.mxu0 0
      %294 = vmatprep.subr.bf16.mxu0 0
      %295 = vmatpush1.bf16.msra.mxu0 0
      %296 = vmatprep.subr.bf16.mxu0 0
      %297 = vmatpush1.bf16.msra.mxu0 0
      %298 = vmatprep.subr.bf16.mxu0 0
      %299 = vmatpush1.bf16.msra.mxu0 0
      %300 = vmatprep.subr.bf16.mxu0 0
      %301 = vmatpush1.bf16.msra.mxu0 0
      %302 = vmatprep.subr.bf16.mxu0 0
      %303 = vmatpush1.bf16.msra.mxu0 0
      %304 = vmatprep.subr.bf16.mxu0 0
      %305 = vmatpush1.bf16.msra.mxu0 0
      %306 = vmatprep.subr.bf16.mxu0 0
      %307 = vmatpush1.bf16.msra.mxu0 0
      %308 = vmatprep.subr.bf16.mxu0 0
      %309 = vmatpush1.bf16.msra.mxu0 0
      %310 = vmatprep.subr.bf16.mxu0 0
      %311 = vmatpush1.bf16.msra.mxu0 0
      %312 = vmatprep.subr.bf16.mxu0 0
      %313 = vmatpush1.bf16.msra.mxu0 0
      %314 = vmatprep.subr.bf16.mxu0 0
      %315 = vmatpush1.bf16.msra.mxu0 0
      %316 = vmatprep.mubr.bf16.mxu0 0
      %317 = vmatmul.mubr.bf16.gmra.mrb[0].mxu0 %v282
      %v318 = vpop.f32.mrb[0].mxu0
      %v319 = vadd.f32 0.0, %v318
      %v320 = vpop.f32.mrb[0].mxu0
      %v321 = vpop.f32.mrb[0].mxu0
      %v322 = vpop.f32.mrb[0].mxu0
      %323 = vdwg.mxu0
      %v324 = vadd.f32 %v266, %v319
      %v325 = vxor.u32 %v324, 2147483648
      %v326 = vmul.f32 %v325, 1.442695
      %v327 = vpow.pop %v326
      %v328 = vadd.f32 %v327, 1.0
      %v329 = vrcp.pop %v328
      %v330 = vmul.f32 1.0, %v329
      %v331 = vtanh.pop %v324
      %333 = vrot.lane.b32.xlu0 %v265, 32
      %v334 = vpop.permute.xlu0 %333
      %v336 = vmul.f32 %v330, %v334
      %338 = vrot.lane.b32.xlu0 %v331, 32
      %v339 = vpop.permute.xlu0 %338
      %v341 = vmul.f32 %v330, %v339
      %343 = vrot.lane.b32.xlu0 %v341, 32
      %v344 = vpop.permute.xlu0 %343
      %v346 = vadd.f32 %v336, %v344
      %v347 = vtanh.pop %v346
      %349 = vrot.lane.b32.xlu0 %v347, 32
      %v350 = vpop.permute.xlu0 %349
      %v352 = vmul.f32 %v330, %v350
      %354 = vrot.lane.b32.xlu0 %v352, 64
      %v355 = vpop.permute.xlu0 %354
      %357 = vst.msk [vmem:[%s248] sm:$0xff] %vm280, %v355
      %s358 = scalar_lea.vmem %s242, 8
      %v359 = vld [vmem:[%s358] sm:$0xff]
      %v360 = vpack.c.bf16 %v352, %v352
      %362 = vrot.lane.b32.xlu0 %v360, 64
      %v363 = vpop.permute.xlu0 %362
      %v365 = vsel %vm280, %v363, 0
      %367 = vmatprep.subr.bf16.mxu0 0
      %368 = vmatpush1.bf16.msra.mxu0 %v276
      %369 = vmatprep.subr.bf16.mxu0 0
      %370 = vmatpush1.bf16.msra.mxu0 %v277
      %371 = vmatprep.subr.bf16.mxu0 0
      %372 = vmatpush1.bf16.msra.mxu0 0
      %373 = vmatprep.subr.bf16.mxu0 0
      %374 = vmatpush1.bf16.msra.mxu0 0
      %375 = vmatprep.subr.bf16.mxu0 0
      %376 = vmatpush1.bf16.msra.mxu0 0
      %377 = vmatprep.subr.bf16.mxu0 0
      %378 = vmatpush1.bf16.msra.mxu0 0
      %379 = vmatprep.subr.bf16.mxu0 0
      %380 = vmatpush1.bf16.msra.mxu0 0
      %381 = vmatprep.subr.bf16.mxu0 0
      %382 = vmatpush1.bf16.msra.mxu0 0
      %383 = vmatprep.subr.bf16.mxu0 0
      %384 = vmatpush1.bf16.msra.mxu0 0
      %385 = vmatprep.subr.bf16.mxu0 0
      %386 = vmatpush1.bf16.msra.mxu0 0
      %387 = vmatprep.subr.bf16.mxu0 0
      %388 = vmatpush1.bf16.msra.mxu0 0
      %389 = vmatprep.subr.bf16.mxu0 0
      %390 = vmatpush1.bf16.msra.mxu0 0
      %391 = vmatprep.subr.bf16.mxu0 0
      %392 = vmatpush1.bf16.msra.mxu0 0
      %393 = vmatprep.subr.bf16.mxu0 0
      %394 = vmatpush1.bf16.msra.mxu0 0
      %395 = vmatprep.subr.bf16.mxu0 0
      %396 = vmatpush1.bf16.msra.mxu0 0
      %397 = vmatprep.subr.bf16.mxu0 0
      %398 = vmatpush1.bf16.msra.mxu0 0
      %399 = vmatprep.mubr.bf16.mxu0 0
      %400 = vmatmul.mubr.bf16.gmra.mrb[0].mxu0 %v365
      %v401 = vpop.f32.mrb[0].mxu0
      %v402 = vadd.f32 0.0, %v401
      %v403 = vpop.f32.mrb[0].mxu0
      %v404 = vpop.f32.mrb[0].mxu0
      %v405 = vpop.f32.mrb[0].mxu0
      %406 = vdwg.mxu0
      %v407 = vadd.f32 %v359, %v402
      %v408 = vxor.u32 %v407, 2147483648
      %v409 = vmul.f32 %v408, 1.442695
      %v410 = vpow.pop %v409
      %v411 = vadd.f32 %v410, 1.0
      %v412 = vrcp.pop %v411
      %v413 = vmul.f32 1.0, %v412
      %v414 = vtanh.pop %v407
      %v415 = vmul.f32 %v413, %v346
      %417 = vrot.lane.b32.xlu0 %v414, 32
      %v418 = vpop.permute.xlu0 %417
      %v420 = vmul.f32 %v413, %v418
      %422 = vrot.lane.b32.xlu0 %v420, 32
      %v423 = vpop.permute.xlu0 %422
      %v425 = vadd.f32 %v415, %v423
      %v426 = vtanh.pop %v425
      %428 = vrot.lane.b32.xlu0 %v426, 32
      %v429 = vpop.permute.xlu0 %428
      %v431 = vmul.f32 %v413, %v429
      %433 = vrot.lane.b32.xlu0 %v431, 64
      %v434 = vpop.permute.xlu0 %433
      %s436 = scalar_lea.vmem %s248, 8
      %437 = vst.msk [vmem:[%s436] sm:$0xff] %vm280, %v434
      %s438 = scalar_lea.vmem %s242, 16
      %v439 = vld [vmem:[%s438] sm:$0xff]
      %v440 = vpack.c.bf16 %v431, %v431
      %442 = vrot.lane.b32.xlu0 %v440, 64
      %v443 = vpop.permute.xlu0 %442
      %v445 = vsel %vm280, %v443, 0
      %447 = vmatprep.subr.bf16.mxu0 0
      %448 = vmatpush1.bf16.msra.mxu0 %v276
      %449 = vmatprep.subr.bf16.mxu0 0
      %450 = vmatpush1.bf16.msra.mxu0 %v277
      %451 = vmatprep.subr.bf16.mxu0 0
      %452 = vmatpush1.bf16.msra.mxu0 0
      %453 = vmatprep.subr.bf16.mxu0 0
      %454 = vmatpush1.bf16.msra.mxu0 0
      %455 = vmatprep.subr.bf16.mxu0 0
      %456 = vmatpush1.bf16.msra.mxu0 0
      %457 = vmatprep.subr.bf16.mxu0 0
      %458 = vmatpush1.bf16.msra.mxu0 0
      %459 = vmatprep.subr.bf16.mxu0 0
      %460 = vmatpush1.bf16.msra.mxu0 0
      %461 = vmatprep.subr.bf16.mxu0 0
      %462 = vmatpush1.bf16.msra.mxu0 0
      %463 = vmatprep.subr.bf16.mxu0 0
      %464 = vmatpush1.bf16.msra.mxu0 0
      %465 = vmatprep.subr.bf16.mxu0 0
      %466 = vmatpush1.bf16.msra.mxu0 0
      %467 = vmatprep.subr.bf16.mxu0 0
      %468 = vmatpush1.bf16.msra.mxu0 0
      %469 = vmatprep.subr.bf16.mxu0 0
      %470 = vmatpush1.bf16.msra.mxu0 0
      %471 = vmatprep.subr.bf16.mxu0 0
      %472 = vmatpush1.bf16.msra.mxu0 0
      %473 = vmatprep.subr.bf16.mxu0 0
      %474 = vmatpush1.bf16.msra.mxu0 0
      %475 = vmatprep.subr.bf16.mxu0 0
      %476 = vmatpush1.bf16.msra.mxu0 0
      %477 = vmatprep.subr.bf16.mxu0 0
      %478 = vmatpush1.bf16.msra.mxu0 0
      %479 = vmatprep.mubr.bf16.mxu0 0
      %480 = vmatmul.mubr.bf16.gmra.mrb[0].mxu0 %v445
      %v481 = vpop.f32.mrb[0].mxu0
      %v482 = vadd.f32 0.0, %v481
      %v483 = vpop.f32.mrb[0].mxu0
      %v484 = vpop.f32.mrb[0].mxu0
      %v485 = vpop.f32.mrb[0].mxu0
      %486 = vdwg.mxu0
      %v487 = vadd.f32 %v439, %v482
      %v488 = vxor.u32 %v487, 2147483648
      %v489 = vmul.f32 %v488, 1.442695
      %v490 = vpow.pop %v489
      %v491 = vadd.f32 %v490, 1.0
      %v492 = vrcp.pop %v491
      %v493 = vmul.f32 1.0, %v492
      %v494 = vtanh.pop %v487
      %v495 = vmul.f32 %v493, %v425
      %497 = vrot.lane.b32.xlu0 %v494, 32
      %v498 = vpop.permute.xlu0 %497
      %v500 = vmul.f32 %v493, %v498
      %502 = vrot.lane.b32.xlu0 %v500, 32
      %v503 = vpop.permute.xlu0 %502
      %v505 = vadd.f32 %v495, %v503
      %v506 = vtanh.pop %v505
      %508 = vrot.lane.b32.xlu0 %v506, 32
      %v509 = vpop.permute.xlu0 %508
      %v511 = vmul.f32 %v493, %v509
      %513 = vrot.lane.b32.xlu0 %v511, 64
      %v514 = vpop.permute.xlu0 %513
      %s516 = scalar_lea.vmem %s248, 16
      %517 = vst.msk [vmem:[%s516] sm:$0xff] %vm280, %v514
      %s518 = scalar_lea.vmem %s242, 24
      %v519 = vld [vmem:[%s518] sm:$0xff]
      %v520 = vpack.c.bf16 %v511, %v511
      %522 = vrot.lane.b32.xlu0 %v520, 64
      %v523 = vpop.permute.xlu0 %522
      %v525 = vsel %vm280, %v523, 0
      %527 = vmatprep.subr.bf16.mxu0 0
      %528 = vmatpush1.bf16.msra.mxu0 %v276
      %529 = vmatprep.subr.bf16.mxu0 0
      %530 = vmatpush1.bf16.msra.mxu0 %v277
      %531 = vmatprep.subr.bf16.mxu0 0
      %532 = vmatpush1.bf16.msra.mxu0 0
      %533 = vmatprep.subr.bf16.mxu0 0
      %534 = vmatpush1.bf16.msra.mxu0 0
      %535 = vmatprep.subr.bf16.mxu0 0
      %536 = vmatpush1.bf16.msra.mxu0 0
      %537 = vmatprep.subr.bf16.mxu0 0
      %538 = vmatpush1.bf16.msra.mxu0 0
      %539 = vmatprep.subr.bf16.mxu0 0
      %540 = vmatpush1.bf16.msra.mxu0 0
      %541 = vmatprep.subr.bf16.mxu0 0
      %542 = vmatpush1.bf16.msra.mxu0 0
      %543 = vmatprep.subr.bf16.mxu0 0
      %544 = vmatpush1.bf16.msra.mxu0 0
      %545 = vmatprep.subr.bf16.mxu0 0
      %546 = vmatpush1.bf16.msra.mxu0 0
      %547 = vmatprep.subr.bf16.mxu0 0
      %548 = vmatpush1.bf16.msra.mxu0 0
      %549 = vmatprep.subr.bf16.mxu0 0
      %550 = vmatpush1.bf16.msra.mxu0 0
      %551 = vmatprep.subr.bf16.mxu0 0
      %552 = vmatpush1.bf16.msra.mxu0 0
      %553 = vmatprep.subr.bf16.mxu0 0
      %554 = vmatpush1.bf16.msra.mxu0 0
      %555 = vmatprep.subr.bf16.mxu0 0
      %556 = vmatpush1.bf16.msra.mxu0 0
      %557 = vmatprep.subr.bf16.mxu0 0
      %558 = vmatpush1.bf16.msra.mxu0 0
      %559 = vmatprep.mubr.bf16.mxu0 0
      %560 = vmatmul.mubr.bf16.gmra.mrb[0].mxu0 %v525
      %v561 = vpop.f32.mrb[0].mxu0
      %v562 = vadd.f32 0.0, %v561
      %v563 = vpop.f32.mrb[0].mxu0
      %v564 = vpop.f32.mrb[0].mxu0
      %v565 = vpop.f32.mrb[0].mxu0
      %566 = vdwg.mxu0
      %v567 = vadd.f32 %v519, %v562
      %v568 = vxor.u32 %v567, 2147483648
      %v569 = vmul.f32 %v568, 1.442695
      %v570 = vpow.pop %v569
      %v571 = vadd.f32 %v570, 1.0
      %v572 = vrcp.pop %v571
      %v573 = vmul.f32 1.0, %v572
      %v574 = vtanh.pop %v567
      %v575 = vmul.f32 %v573, %v505
      %577 = vrot.lane.b32.xlu0 %v574, 32
      %v578 = vpop.permute.xlu0 %577
      %v580 = vmul.f32 %v573, %v578
      %582 = vrot.lane.b32.xlu0 %v580, 32
      %v583 = vpop.permute.xlu0 %582
      %v585 = vadd.f32 %v575, %v583
      %v586 = vtanh.pop %v585
      %588 = vrot.lane.b32.xlu0 %v586, 32
      %v589 = vpop.permute.xlu0 %588
      %v591 = vmul.f32 %v573, %v589
      %593 = vrot.lane.b32.xlu0 %v591, 64
      %v594 = vpop.permute.xlu0 %593
      %s596 = scalar_lea.vmem %s248, 24
      %597 = vst.msk [vmem:[%s596] sm:$0xff] %vm280, %v594
      %598 = vst.msk [vmem:[#allocation2] sm:$0xff] %vm280, %v594
      %600 = vrot.lane.b32.xlu0 %v585, 96
      %v601 = vpop.permute.xlu0 %600
      %603 = vst.msk [vmem:[#allocation3] sm:$0xff] %vm280, %v601
      %604 = vst.msk [vmem:[%s5] sm:$0xff] %vm280, %v594
      %605 = vst.msk [vmem:[%s6] sm:$0xff] %vm280, %v601
      %s606 = smul.u32 4, %s18
      %p607 = scmp.lt.s32.totalorder %s606, 7
      %s608 = scalar_select %p607, %s606, 7
      %s609 = smul.addr %s608, 8
      %s610 = scalar_lea.vmem %s4, %s609
      // Predicated region
      $region41: #{recurrent_decoder2_forward.4} parent=35 // pred_check
        %p611 = pneg %p125
      $region42: #{recurrent_decoder2_forward.4} parent=35 // pred_check_branch
        %613 = sbr.rel (%p611) target = $region44
      $region43: #{recurrent_decoder2_forward.4} parent=35 // pred_region
        %s614 = smul.u32 4, %s18
      $region44: #{recurrent_decoder2_forward.4} parent=35 // pred_fallthru
        _
      // Predicated region
      $region45: #{recurrent_decoder2_forward.4} parent=35 // pred_check
        %p615 = pneg %p146
      $region46: #{recurrent_decoder2_forward.4} parent=35 // pred_check_branch
        %617 = sbr.rel (%p615) target = $region48
      $region47: #{recurrent_decoder2_forward.4} parent=35 // pred_region
        _
      $region48: #{recurrent_decoder2_forward.4} parent=35 // pred_fallthru
        _
      // Predicated region
      $region49: #{recurrent_decoder2_forward.4} parent=35 // pred_check
        %p618 = pneg %p167
      $region50: #{recurrent_decoder2_forward.4} parent=35 // pred_check_branch
        %620 = sbr.rel (%p618) target = $region52
      $region51: #{recurrent_decoder2_forward.4} parent=35 // pred_region
        _
      $region52: #{recurrent_decoder2_forward.4} parent=35 // pred_fallthru
        _
      // Predicated region
      $region53: #{recurrent_decoder2_forward.4} parent=35 // pred_check
        %p621 = pneg %p146
      $region54: #{recurrent_decoder2_forward.4} parent=35 // pred_check_branch
        %623 = sbr.rel (%p621) target = $region56
      $region55: #{recurrent_decoder2_forward.4} parent=35 // pred_region
        _
      $region56: #{recurrent_decoder2_forward.4} parent=35 // pred_fallthru
        _
      // Predicated region
      $region57: #{recurrent_decoder2_forward.4} parent=35 // pred_check
        %p624 = pneg %p167
      $region58: #{recurrent_decoder2_forward.4} parent=35 // pred_check_branch
        %626 = sbr.rel (%p624) target = $region60
      $region59: #{recurrent_decoder2_forward.4} parent=35 // pred_region
        _
      $region60: #{recurrent_decoder2_forward.4} parent=35 // pred_fallthru
        _
    $region36: #{recurrent_decoder2_forward.4} parent=5 // pred_fallthru
      _
    %p627 = scmp.le.s32.totalorder 2, %s13
    // Predicated region
    $region61: #{recurrent_decoder2_forward.4} parent=5 // pred_check
      %p628 = pneg %p627
    $region62: #{recurrent_decoder2_forward.4} parent=5 // pred_check_branch
      %630 = sbr.rel (%p628) target = $region64
    $region63: #{recurrent_decoder2_forward.4} parent=5 // pred_region
      %s631 = ssub.s32 %s13, 2
      // Predicated region
      $region65: #{recurrent_decoder2_forward.4} parent=63 // pred_check
        %p632 = pneg %p131
      $region66: #{recurrent_decoder2_forward.4} parent=63 // pred_check_branch
        %634 = sbr.rel (%p632) target = $region68
      $region67: #{recurrent_decoder2_forward.4} parent=63 // pred_region
        %s635 = smul.u32 4, %s19
        %p636 = scmp.lt.s32.totalorder %s635, 7
        %s637 = scalar_select %p636, %s635, 7
        %s638 = smul.addr %s637, 8
        %s639 = scalar_lea.vmem %s4, %s638
      $region68: #{recurrent_decoder2_forward.4} parent=63 // pred_fallthru
        _
    $region64: #{recurrent_decoder2_forward.4} parent=5 // pred_fallthru
      _
  $region6: #{recurrent_decoder2_forward.4} parent=0 // loop_footer
    %s17 = sadd.s32 1, %s13
  $region7: #{recurrent_decoder2_forward.4} parent=0 // loop_footer_branch
    %12 = sbr.rel target = $region3
  $region8: #{recurrent_decoder2_forward.4} parent=0 // loop_exit
    _

// kernel: recurrent_decoder2_forward.3
$region0: #{recurrent_decoder2_forward.3}
  #allocation0 [shape = 'u32[]', space=smem, size = 0x4, offset = 0x4, fixed_abs, tag = 'smem constant byte address 0x4 - core index']
  #allocation1 [shape = 'u32[144,128]{1,0:T(1,128)}', space=vmem, size = 0x12000, scoped, tag = 'internal scratch']
  #allocation2 [shape = 'f32[64,128]{1,0:T(8,128)}', space=vmem, size = 0x8000, scoped, tag = 'scratch operand']
  %s0 = inlined_call_operand.vmem [shape: bf16[64,32], index: 0, kind: input, shape index: {}]
  %s1 = inlined_call_operand.vmem [shape: bf16[32,128], index: 1, kind: input, shape index: {}]
  %s2 = inlined_call_operand.vmem [shape: f32[1,128], index: 2, kind: input, shape index: {}]
  %s3 = inlined_call_operand.vmem [shape: f32[64,128], index: 3, kind: output, shape index: {}]
  %s4 = sld [smem:[#allocation0]]
  $region30: #{recurrent_decoder2_forward.3} parent=0
    _
  %s6 = ssub.s32 1, %s4
  %s7 = scalar_select 0, %s6, %s4
  // Predicated region
  $region2: #{recurrent_decoder2_forward.3} parent=0 // pred_check
    _
  $region3: #{recurrent_decoder2_forward.3} parent=0 // pred_check_branch
    %9 = sbr.rel (0) target = $region5
  $region4: #{recurrent_decoder2_forward.3} parent=0 // pred_region
    _
  $region5: #{recurrent_decoder2_forward.3} parent=0 // pred_fallthru
    _
  // Predicated region
  $region6: #{recurrent_decoder2_forward.3} parent=0 // pred_check
    _
  $region7: #{recurrent_decoder2_forward.3} parent=0 // pred_check_branch
    %11 = sbr.rel (0) target = $region9
  $region8: #{recurrent_decoder2_forward.3} parent=0 // pred_region
    _
  $region9: #{recurrent_decoder2_forward.3} parent=0 // pred_fallthru
    _
  // Predicated region
  $region10: #{recurrent_decoder2_forward.3} parent=0 // pred_check
    _
  $region11: #{recurrent_decoder2_forward.3} parent=0 // pred_check_branch
    %13 = sbr.rel (0) target = $region13
  $region12: #{recurrent_decoder2_forward.3} parent=0 // pred_region
    _
  $region13: #{recurrent_decoder2_forward.3} parent=0 // pred_fallthru
    _
  %p15 = scmp.eq.s32.totalorder 0, 0
  // Predicated region
  $region14: #{recurrent_decoder2_forward.3} parent=0 // pred_check
    %p16 = pneg %p15
  $region15: #{recurrent_decoder2_forward.3} parent=0 // pred_check_branch
    %18 = sbr.rel (%p16) target = $region17
  $region16: #{recurrent_decoder2_forward.3} parent=0 // pred_region
    %19 = vst [vmem:[#allocation2] sm:$0xff] 0.0
    %20 = vst [vmem:[#allocation2 + $0x8] sm:$0xff] 0.0
    %21 = vst [vmem:[#allocation2 + $0x10] sm:$0xff] 0.0
    %22 = vst [vmem:[#allocation2 + $0x18] sm:$0xff] 0.0
    %23 = vst [vmem:[#allocation2 + $0x20] sm:$0xff] 0.0
    %24 = vst [vmem:[#allocation2 + $0x28] sm:$0xff] 0.0
    %25 = vst [vmem:[#allocation2 + $0x30] sm:$0xff] 0.0
    %26 = vst [vmem:[#allocation2 + $0x38] sm:$0xff] 0.0
  $region17: #{recurrent_decoder2_forward.3} parent=0 // pred_fallthru
    _
  %v27 = vld [vmem:[#allocation2] sm:$0xff]
  %v28 = vld [vmem:[#allocation2 + $0x8] sm:$0xff]
  %v29 = vld [vmem:[#allocation2 + $0x10] sm:$0xff]
  %v30 = vld [vmem:[#allocation2 + $0x18] sm:$0xff]
  %v31 = vld [vmem:[#allocation2 + $0x20] sm:$0xff]
  %v32 = vld [vmem:[#allocation2 + $0x28] sm:$0xff]
  %v33 = vld [vmem:[#allocation2 + $0x30] sm:$0xff]
  %v34 = vld [vmem:[#allocation2 + $0x38] sm:$0xff]
  %v35 = vld [vmem:[%s0] sm:$0xf]
  %v36 = vld [vmem:[%s0 + $0x4] sm:$0xf]
  %v37 = vld [vmem:[%s0 + $0x8] sm:$0xf]
  %v38 = vld [vmem:[%s0 + $0xc] sm:$0xf]
  %v39 = vld [vmem:[%s0 + $0x10] sm:$0xf]
  %v40 = vld [vmem:[%s0 + $0x14] sm:$0xf]
  %v41 = vld [vmem:[%s0 + $0x18] sm:$0xf]
  %v42 = vld [vmem:[%s0 + $0x1c] sm:$0xf]
  %v43 = vld [vmem:[%s1] sm:$0xf]
  %v44 = vld [vmem:[%s1 + $0x4] sm:$0xf]
  %v45 = vld [vmem:[%s1 + $0x8] sm:$0xf]
  %v46 = vld [vmem:[%s1 + $0xc] sm:$0xf]
  %v55 = vunpack.c.l.b16 %v35
  %v56 = vunpack.c.l.b16 %v36
  %v57 = vunpack.c.l.b16 %v37
  %v58 = vunpack.c.l.b16 %v38
  %v59 = vunpack.c.l.b16 %v39
  %v60 = vunpack.c.l.b16 %v40
  %v61 = vunpack.c.l.b16 %v41
  %v62 = vunpack.c.l.b16 %v42
  %v63 = vpack.c.b16 %v56, %v55
  %v64 = vpack.c.b16 %v58, %v57
  %v65 = vpack.c.b16 %v60, %v59
  %v66 = vpack.c.b16 %v62, %v61
  %v71 = vunpack.c.l.b16 %v43
  %v72 = vunpack.c.l.b16 %v44
  %v73 = vunpack.c.l.b16 %v45
  %v74 = vunpack.c.l.b16 %v46
  %v75 = vpack.c.b16 %v72, %v71
  %v76 = vpack.c.b16 %v74, %v73
  %vm79 = vcmask 261120
  %v81 = vsel %vm79, %v63, 0
  %v84 = vsel %vm79, %v64, 0
  %v87 = vsel %vm79, %v65, 0
  %v90 = vsel %vm79, %v66, 0
  %92 = vmatprep.subr.bf16.mxu0 0
  %93 = vmatpush1.bf16.msra.mxu0 %v75
  %94 = vmatprep.subr.bf16.mxu0 0
  %95 = vmatpush1.bf16.msra.mxu0 %v76
  %96 = vmatprep.subr.bf16.mxu0 0
  %97 = vmatpush1.bf16.msra.mxu0 0
  %98 = vmatprep.subr.bf16.mxu0 0
  %99 = vmatpush1.bf16.msra.mxu0 0
  %100 = vmatprep.subr.bf16.mxu0 0
  %101 = vmatpush1.bf16.msra.mxu0 0
  %102 = vmatprep.subr.bf16.mxu0 0
  %103 = vmatpush1.bf16.msra.mxu0 0
  %104 = vmatprep.subr.bf16.mxu0 0
  %105 = vmatpush1.bf16.msra.mxu0 0
  %106 = vmatprep.subr.bf16.mxu0 0
  %107 = vmatpush1.bf16.msra.mxu0 0
  %108 = vmatprep.subr.bf16.mxu0 0
  %109 = vmatpush1.bf16.msra.mxu0 0
  %110 = vmatprep.subr.bf16.mxu0 0
  %111 = vmatpush1.bf16.msra.mxu0 0
  %112 = vmatprep.subr.bf16.mxu0 0
  %113 = vmatpush1.bf16.msra.mxu0 0
  %114 = vmatprep.subr.bf16.mxu0 0
  %115 = vmatpush1.bf16.msra.mxu0 0
  %116 = vmatprep.subr.bf16.mxu0 0
  %117 = vmatpush1.bf16.msra.mxu0 0
  %118 = vmatprep.subr.bf16.mxu0 0
  %119 = vmatpush1.bf16.msra.mxu0 0
  %120 = vmatprep.subr.bf16.mxu0 0
  %121 = vmatpush1.bf16.msra.mxu0 0
  %122 = vmatprep.subr.bf16.mxu0 0
  %123 = vmatpush1.bf16.msra.mxu0 0
  %124 = vmatprep.mubr.bf16.mxu0 0
  %125 = vmatmul.mubr.bf16.gmra.mrb[0].mxu0 %v81
  %v126 = vpop.f32.mrb[0].mxu0
  %v127 = vadd.f32 0.0, %v126
  %v128 = vpop.f32.mrb[0].mxu0
  %v129 = vpop.f32.mrb[0].mxu0
  %v130 = vadd.f32 0.0, %v129
  %v131 = vpop.f32.mrb[0].mxu0
  %132 = vmatprep.mubr.bf16.mxu0 0
  %133 = vmatmul.mubr.bf16.gmra.mrb[0].mxu0 %v84
  %v134 = vpop.f32.mrb[0].mxu0
  %v135 = vadd.f32 0.0, %v134
  %v136 = vpop.f32.mrb[0].mxu0
  %v137 = vpop.f32.mrb[0].mxu0
  %v138 = vadd.f32 0.0, %v137
  %v139 = vpop.f32.mrb[0].mxu0
  %140 = vmatprep.mubr.bf16.mxu0 0
  %141 = vmatmul.mubr.bf16.gmra.mrb[0].mxu0 %v87
  %v142 = vpop.f32.mrb[0].mxu0
  %v143 = vadd.f32 0.0, %v142
  %v144 = vpop.f32.mrb[0].mxu0
  %v145 = vpop.f32.mrb[0].mxu0
  %v146 = vadd.f32 0.0, %v145
  %v147 = vpop.f32.mrb[0].mxu0
  %148 = vmatprep.mubr.bf16.mxu0 0
  %149 = vmatmul.mubr.bf16.gmra.mrb[0].mxu0 %v90
  %v150 = vpop.f32.mrb[0].mxu0
  %v151 = vadd.f32 0.0, %v150
  %v152 = vpop.f32.mrb[0].mxu0
  %v153 = vpop.f32.mrb[0].mxu0
  %v154 = vadd.f32 0.0, %v153
  %v155 = vpop.f32.mrb[0].mxu0
  %156 = vdwg.mxu0
  %v157 = vadd.f32 %v27, %v127
  %v158 = vadd.f32 %v28, %v130
  %v159 = vadd.f32 %v29, %v135
  %v160 = vadd.f32 %v30, %v138
  %v161 = vadd.f32 %v31, %v143
  %v162 = vadd.f32 %v32, %v146
  %v163 = vadd.f32 %v33, %v151
  %v164 = vadd.f32 %v34, %v154
  %165 = vst [vmem:[#allocation2] sm:$0xff] %v157
  %166 = vst [vmem:[#allocation2 + $0x8] sm:$0xff] %v158
  %167 = vst [vmem:[#allocation2 + $0x10] sm:$0xff] %v159
  %168 = vst [vmem:[#allocation2 + $0x18] sm:$0xff] %v160
  %169 = vst [vmem:[#allocation2 + $0x20] sm:$0xff] %v161
  %170 = vst [vmem:[#allocation2 + $0x28] sm:$0xff] %v162
  %171 = vst [vmem:[#allocation2 + $0x30] sm:$0xff] %v163
  %172 = vst [vmem:[#allocation2 + $0x38] sm:$0xff] %v164
  // Predicated region
  $region18: #{recurrent_decoder2_forward.3} parent=0 // pred_check
    %p173 = pneg %p15
  $region19: #{recurrent_decoder2_forward.3} parent=0 // pred_check_branch
    %175 = sbr.rel (%p173) target = $region21
  $region20: #{recurrent_decoder2_forward.3} parent=0 // pred_region
    %v176 = vld [vmem:[#allocation2] sm:$0xff]
    %v177 = vld [vmem:[#allocation2 + $0x8] sm:$0xff]
    %v178 = vld [vmem:[#allocation2 + $0x10] sm:$0xff]
    %v179 = vld [vmem:[#allocation2 + $0x18] sm:$0xff]
    %v180 = vld [vmem:[#allocation2 + $0x20] sm:$0xff]
    %v181 = vld [vmem:[#allocation2 + $0x28] sm:$0xff]
    %v182 = vld [vmem:[#allocation2 + $0x30] sm:$0xff]
    %v183 = vld [vmem:[#allocation2 + $0x38] sm:$0xff]
    %v184 = vld [vmem:[%s2] sm:$0x1]
    %v186 = vlaneseq
    %v187 = vshrl.u32 %v186, 7
    %v188 = vsub.s32 0, %v187
    %v189 = vrot.slane %v184, %v188
    %v191 = vadd.f32 %v176, %v189
    %v192 = vadd.f32 %v177, %v189
    %v193 = vadd.f32 %v178, %v189
    %v194 = vadd.f32 %v179, %v189
    %v195 = vadd.f32 %v180, %v189
    %v196 = vadd.f32 %v181, %v189
    %v197 = vadd.f32 %v182, %v189
    %v198 = vadd.f32 %v183, %v189
    %199 = vst [vmem:[%s3] sm:$0xff] %v191
    %200 = vst [vmem:[%s3 + $0x8] sm:$0xff] %v192
    %201 = vst [vmem:[%s3 + $0x10] sm:$0xff] %v193
    %202 = vst [vmem:[%s3 + $0x18] sm:$0xff] %v194
    %203 = vst [vmem:[%s3 + $0x20] sm:$0xff] %v195
    %204 = vst [vmem:[%s3 + $0x28] sm:$0xff] %v196
    %205 = vst [vmem:[%s3 + $0x30] sm:$0xff] %v197
    %206 = vst [vmem:[%s3 + $0x38] sm:$0xff] %v198
  $region21: #{recurrent_decoder2_forward.3} parent=0 // pred_fallthru
    _
  // Predicated region
  $region22: #{recurrent_decoder2_forward.3} parent=0 // pred_check
    _
  $region23: #{recurrent_decoder2_forward.3} parent=0 // pred_check_branch
    %208 = sbr.rel (0) target = $region25
  $region24: #{recurrent_decoder2_forward.3} parent=0 // pred_region
    _
  $region25: #{recurrent_decoder2_forward.3} parent=0 // pred_fallthru
    _
  // Predicated region
  $region26: #{recurrent_decoder2_forward.3} parent=0 // pred_check
    _
  $region27: #{recurrent_decoder2_forward.3} parent=0 // pred_check_branch
    %210 = sbr.rel (0) target = $region29
  $region28: #{recurrent_decoder2_forward.3} parent=0 // pred_region
    _
  $region29: #{recurrent_decoder2_forward.3} parent=0 // pred_fallthru
    _

</llo_original>
